<compile_context>
chip_gen: v7x
topology: tpu7x:2x2x1
jax: 0.10.0
libtpu: 0.0.40
codegen_flags: <defaults>
</compile_context>

<pallas_src>
import functools

import jax
import jax.numpy as jnp
from jax.experimental import pallas as pl
from jax.experimental.pallas import tpu as pltpu

LEAKY_SLOPE = 0.01     # torch.nn.LeakyReLU default negative_slope
LANE = 128             # TPU lane width


def _lrelu(v):
    return jnp.where(v >= 0, v, LEAKY_SLOPE * v)


def _round_up(v, m):
    return (v + m - 1) // m * m


def _pad2(a, rows, cols, dtype=None):
    r, c = a.shape
    out = jnp.pad(a, ((0, rows - r), (0, cols - c)))
    return out.astype(dtype) if dtype is not None else out


def _single_buffered(shape, index_map):
    """Block-invariant operand: single pipeline buffer (pure VMEM saving)."""
    try:
        return pl.BlockSpec(shape, index_map, pipeline_mode=pl.Buffered(1))
    except TypeError:  # BlockSpec without pipeline_mode support
        return pl.BlockSpec(shape, index_map)


# ----------------------------- Pallas kernels ------------------------------ #
def _prepass_kernel(x_ref, w1_ref, w2t_ref, xw_ref, xw2t_ref):
    """Row block i (one shot): XW = X @ W1 (bf16), XW2T = lrelu(X) @ W2_top."""
    x = x_ref[...]                                                    # bf16
    xw_ref[...] = jnp.dot(
        x, w1_ref[...], preferred_element_type=jnp.float32).astype(xw_ref.dtype)
    xl = _lrelu(x.astype(jnp.float32)).astype(jnp.bfloat16)
    xw2t_ref[...] = jnp.dot(xl, w2t_ref[...],
                            preferred_element_type=jnp.float32)


def _gcn1_kernel(a_ref, xw_ref, b1_ref, xw2t_ref, w2b_ref, yw_ref, acc_ref,
                 *, tile, src_resident):
    """Row block i: yw = lrelu(x) @ W2_top + lrelu(A_hat @ XW + b1) @ W2_bot."""
    k = pl.program_id(1)

    @pl.when(k == 0)
    def _():
        acc_ref[...] = jnp.zeros_like(acc_ref)

    if src_resident:
        off = pl.multiple_of(k * tile, tile)
        src = xw_ref[pl.ds(off, tile), :]
    else:
        src = xw_ref[...]
    acc_ref[...] += jnp.dot(a_ref[...], src, preferred_element_type=jnp.float32)

    @pl.when(k == pl.num_programs(1) - 1)
    def _():
        y1 = _lrelu(acc_ref[...] + b1_ref[...])                       # f32
        # [x, y1] @ W2 == lrelu(x) @ W2_top (pre-pass) + y1 @ W2_bot
        yw = xw2t_ref[...] + jnp.dot(y1.astype(jnp.bfloat16), w2b_ref[...],
                                     preferred_element_type=jnp.float32)
        yw_ref[...] = yw.astype(yw_ref.dtype)


def _gcn2_kernel(a_ref, yw_ref, b2_ref, wp_ref, bp_ref, z_ref, out_ref,
                 acc_ref, *, tile, src_resident):
    """Row block i: z = lrelu(A_hat @ YW + b2);  out = z @ Wp + bp."""
    k = pl.program_id(1)

    @pl.when(k == 0)
    def _():
        acc_ref[...] = jnp.zeros_like(acc_ref)

    if src_resident:
        off = pl.multiple_of(k * tile, tile)
        src = yw_ref[pl.ds(off, tile), :]
    else:
        src = yw_ref[...]
    acc_ref[...] += jnp.dot(a_ref[...], src, preferred_element_type=jnp.float32)

    @pl.when(k == pl.num_programs(1) - 1)
    def _():
        z = _lrelu(acc_ref[...] + b2_ref[...])                        # f32
        z_ref[...] = z.astype(z_ref.dtype)                            # bf16 writeback
        # lane-dense (tile, 128) pooler slab -> unmasked stores
        out_ref[...] = (jnp.dot(z.astype(jnp.bfloat16), wp_ref[...],
                                preferred_element_type=jnp.float32)
                        + bp_ref[...])


# ------------------------------- Wrapper ------------------------------------ #
def _pick_tile(n):
    # 256-wide blocks feed the 2x256^2 MXUs (v6e/v7x) and cut grid-step count
    # 4x, but only when they don't inflate the zero padding; for large graphs
    # (n >= 1024) relative padding waste is small and >= 2 row blocks remain
    # for the v7x megacore split.  v5e (4x128^2 MXU) is equally happy at 128.
    if _round_up(n, 256) == _round_up(n, 128) or n >= 1024:
        return 256
    return 128


@functools.partial(jax.jit, static_argnames=("tile",))
def gnn_forward(a_hat, x, params, *, tile=None):
    """Fused GNN forward. Returns (z, pooler_score, pooler_helpful, pooler_good)."""
    n, d = x.shape
    w1, b1, w2, b2, wp, bp = params

    if tile is None:
        tile = _pick_tile(n)
    n_pad = _round_up(n, tile)
    d_pad = _round_up(d, LANE)
    p_pad = LANE                                   # lane-dense pooler slab

    # bf16 MXU operands, zero-padded to lane/sublane-friendly shapes.
    # NOTE: bf16 A_hat costs ~3 significant digits on the deg^-1/2 weights;
    # fine at 5e-2 tolerance, switch A_hat to f32 if tighter accuracy needed.
    a_p = _pad2(a_hat, n_pad, n_pad, jnp.bfloat16)
    x_p = _pad2(x, n_pad, d_pad, jnp.bfloat16)
    w1_p = _pad2(w1, d_pad, d_pad, jnp.bfloat16)
    w2t_p = _pad2(w2[:d], d_pad, d_pad, jnp.bfloat16)   # acts on x
    w2b_p = _pad2(w2[d:], d_pad, d_pad, jnp.bfloat16)   # acts on y1
    wp_p = _pad2(wp, d_pad, p_pad, jnp.bfloat16)
    b1_p = _pad2(b1, 1, d_pad)                          # f32
    b2_p = _pad2(b2, 1, d_pad)                          # f32
    bp_p = _pad2(bp, 1, p_pad)                          # f32

    n_blk = n_pad // tile
    # Actual footprint at these tiles is a few MiB; 32 MiB leaves ample
    # headroom and stays well under v7x's 64 MiB physical VMEM per TensorCore.
    vmem_limit = 32 * 1024 * 1024

    # ---- stage 0: one-shot pre-pass  XW = X@W1,  XW2T = lrelu(X)@W2_top ---- #
    inv1 = lambda shape: _single_buffered(shape, lambda i: (0, 0))
    xw, xw2t = pl.pallas_call(
        _prepass_kernel,
        out_shape=(jax.ShapeDtypeStruct((n_pad, d_pad), jnp.bfloat16),
                   jax.ShapeDtypeStruct((n_pad, d_pad), jnp.float32)),
        grid=(n_blk,),
        in_specs=[
            pl.BlockSpec((tile, d_pad), lambda i: (i, 0)),      # X rows
            inv1((d_pad, d_pad)),                               # W1
            inv1((d_pad, d_pad)),                               # W2 top
        ],
        out_specs=(pl.BlockSpec((tile, d_pad), lambda i: (i, 0)),
                   pl.BlockSpec((tile, d_pad), lambda i: (i, 0))),
        compiler_params=pltpu.CompilerParams(
            dimension_semantics=("parallel",),
            vmem_limit_bytes=vmem_limit),
        cost_estimate=pl.CostEstimate(
            flops=int(4 * n_pad * d_pad * d_pad), transcendentals=0,
            bytes_accessed=int(2 * (x_p.size + 2 * d_pad * d_pad)
                               + 6 * n_pad * d_pad)),
    )(x_p, w1_p, w2t_p)

    # Keep XW / YW fully VMEM-resident across the k-reduction when they fit,
    # avoiding the n_blk-fold re-DMA of the same source rows.
    src_resident = (n_pad * d_pad * 2) <= (8 * 1024 * 1024)

    grid = (n_blk, n_blk)                   # (dst row blocks, src row blocks)
    cparams = pltpu.CompilerParams(
        dimension_semantics=("parallel", "arbitrary"),  # rows across TCs (v7x)
        vmem_limit_bytes=vmem_limit)
    inv2 = lambda shape: _single_buffered(shape, lambda i, k: (0, 0))
    if src_resident:
        src_spec = inv2((n_pad, d_pad))                          # whole XW/YW
    else:
        src_spec = pl.BlockSpec((tile, d_pad), lambda i, k: (k, 0))

    # ---- stage 1: yw = lrelu(x)@W2t + lrelu(A_hat @ XW + b1)@W2b ----------- #
    flops1 = 2 * n_pad * n_pad * d_pad + 2 * n_pad * d_pad * d_pad
    bytes1 = (2 * (a_p.size + 2 * n_pad * d_pad + d_pad * d_pad)
              + 4 * (n_pad * d_pad + d_pad))
    yw = pl.pallas_call(
        functools.partial(_gcn1_kernel, tile=tile, src_resident=src_resident),
        out_shape=jax.ShapeDtypeStruct((n_pad, d_pad), jnp.bfloat16),
        grid=grid,
        in_specs=[
            pl.BlockSpec((tile, tile), lambda i, k: (i, k)),     # A_hat block
            src_spec,                                            # XW source rows
            inv2((1, d_pad)),                                    # b1
            pl.BlockSpec((tile, d_pad), lambda i, k: (i, 0)),    # XW2T (dst rows)
            inv2((d_pad, d_pad)),                                # W2 bottom
        ],
        out_specs=pl.BlockSpec((tile, d_pad), lambda i, k: (i, 0)),
        scratch_shapes=[pltpu.VMEM((tile, d_pad), jnp.float32)],
        compiler_params=cparams,
        cost_estimate=pl.CostEstimate(flops=int(flops1), transcendentals=0,
                                      bytes_accessed=int(bytes1)),
    )(a_p, xw, b1_p, xw2t, w2b_p)

    # ---- stage 2: z = lrelu(A_hat @ YW + b2);  out = z @ Wp + bp ----------- #
    flops2 = 2 * n_pad * n_pad * d_pad + 2 * n_pad * d_pad * p_pad
    bytes2 = (2 * (a_p.size + 2 * n_pad * d_pad + d_pad * p_pad)
              + 4 * (n_pad * p_pad + d_pad + p_pad))
    z_pad, out_pad = pl.pallas_call(
        functools.partial(_gcn2_kernel, tile=tile, src_resident=src_resident),
        out_shape=(jax.ShapeDtypeStruct((n_pad, d_pad), jnp.bfloat16),
                   jax.ShapeDtypeStruct((n_pad, p_pad), jnp.float32)),
        grid=grid,
        in_specs=[
            pl.BlockSpec((tile, tile), lambda i, k: (i, k)),     # A_hat block
            src_spec,                                            # YW source rows
            inv2((1, d_pad)),                                    # b2
            inv2((d_pad, p_pad)),                                # pooler W (pad)
            inv2((1, p_pad)),                                    # pooler b (pad)
        ],
        out_specs=(pl.BlockSpec((tile, d_pad), lambda i, k: (i, 0)),
                   pl.BlockSpec((tile, p_pad), lambda i, k: (i, 0))),
        scratch_shapes=[pltpu.VMEM((tile, d_pad), jnp.float32)],
        compiler_params=cparams,
        cost_estimate=pl.CostEstimate(flops=int(flops2), transcendentals=0,
                                      bytes_accessed=int(bytes2)),
    )(a_p, yw, b2_p, wp_p, bp_p)

    z = z_pad[:n, :d].astype(jnp.float32)
    out = out_pad[:n, :3]
    return z, out[:, 0], out[:, 1], out[:, 2]


# ------------------------------ JAX glue ------------------------------------ #
def gcn_normalized_adjacency(edge_index, num_nodes):
    """Dense A_hat with PyG gcn_norm semantics (add_remaining_self_loops):
    all pre-existing self-loop edges are dropped and exactly one weight-1
    self-loop per node is added, then symmetric deg^-1/2 normalization."""
    src = edge_index[0]
    dst = edge_index[1]
    w = jnp.where(src == dst, 0.0, 1.0).astype(jnp.float32)
    loops = jnp.arange(num_nodes, dtype=edge_index.dtype)
    src = jnp.concatenate([src, loops])
    dst = jnp.concatenate([dst, loops])
    w = jnp.concatenate([w, jnp.ones((num_nodes,), jnp.float32)])

    deg = jnp.zeros((num_nodes,), jnp.float32).at[dst].add(w)
    dinv = jnp.where(deg > 0, jax.lax.rsqrt(deg), 0.0)
    norm = dinv[src] * w * dinv[dst]

    # out[dst] += norm * x[src]  ==>  A_hat[dst, src] = norm
    return jnp.zeros((num_nodes, num_nodes), jnp.float32).at[dst, src].add(norm)


def init_params(key, dims):
    """Deterministic synthetic parameter init (shapes follow Gnn.__init__)."""
    k1, k2, k3, k4, k5, k6 = jax.random.split(key, 6)
    scale = 0.1
    w1 = scale * jax.random.normal(k1, (dims, dims), jnp.float32)        # gnn1 W
    b1 = scale * jax.random.normal(k2, (1, dims), jnp.float32)           # gnn1 b
    w2 = scale * jax.random.normal(k3, (2 * dims, dims), jnp.float32)    # gnn2 W
    b2 = scale * jax.random.normal(k4, (1, dims), jnp.float32)           # gnn2 b
    wp = scale * jax.random.normal(k5, (dims, 3), jnp.float32)           # pooler W
    bp = scale * jax.random.normal(k6, (1, 3), jnp.float32)              # pooler b
    return (w1, b1, w2, b2, wp, bp)


# ------------------------------ Reference ----------------------------------- #
def gnn_reference(a_hat, x, params):
    w1, b1, w2, b2, wp, bp = params
    y1 = a_hat @ (x @ w1) + b1
    y = _lrelu(jnp.concatenate([x, y1], axis=-1))
    z = _lrelu(a_hat @ (y @ w2) + b2)
    out = z @ wp + bp
    return z, out[..., 0], out[..., 1], out[..., 2]


if __name__ == "__main__":
    def run_case(n, d, e):
        key = jax.random.PRNGKey(0)
        k_x, k_e, k_p = jax.random.split(key, 3)
        x = jax.random.normal(k_x, (n, d), jnp.float32)
        edge_index = jax.random.randint(k_e, (2, e), 0, n, dtype=jnp.int32)
        params = init_params(k_p, d)
        a_hat = gcn_normalized_adjacency(edge_index, n)

        outs = gnn_forward(a_hat, x, params)
        jax.block_until_ready(outs)

        # correctness vs pure-JAX f32 reference (bf16 MXU operands in kernel).
        refs = gnn_reference(a_hat, x, params)
        for o, r in zip(outs, refs):
            assert jnp.allclose(o, r, atol=5e-2, rtol=5e-2), \
                float(jnp.max(jnp.abs(o - r)))

    # small, single-block path (grid (1,1))
    run_case(n=16, d=32, e=24)
    # larger graph: exercises the multi-block k-reduction, epilogue ordering
    # and the 'parallel' row-block axis (grid (3,3) at tile=128)
    run_case(n=300, d=64, e=1200)

    print("KERNEL_OK")
</pallas_src>

<mosaic_0001>
module attributes {stable_mosaic.version = 11 : i64} {
  func.func @_prepass_kernel(%arg0: i32, %arg1: memref<128x128xbf16, #tpu.memory_space<vmem>>, %arg2: memref<128x128xbf16, #tpu.memory_space<vmem>>, %arg3: memref<128x128xbf16, #tpu.memory_space<vmem>>, %arg4: memref<128x128xbf16, #tpu.memory_space<vmem>>, %arg5: memref<128x128xf32, #tpu.memory_space<vmem>>) attributes {dimension_semantics = [#tpu.dimension_semantics<parallel>], iteration_bounds = array<i64: 1>, scalar_prefetch = 0 : i64, scratch_operands = 0 : i64, tpu.core_type = #tpu.core_type<tc>, window_params = [{transform_indices = @transform_0, window_bounds = array<i64: 128, 128>}, {pipeline_mode = #tpu.pipeline_mode<synchronous>, transform_indices = @transform_1, window_bounds = array<i64: 128, 128>}, {pipeline_mode = #tpu.pipeline_mode<synchronous>, transform_indices = @transform_2, window_bounds = array<i64: 128, 128>}, {transform_indices = @transform_3, window_bounds = array<i64: 128, 128>}, {transform_indices = @transform_4, window_bounds = array<i64: 128, 128>}]} {
    %c0 = arith.constant 0 : index
    %c0_0 = arith.constant 0 : index
    %0 = vector.load %arg1[%c0, %c0_0] : memref<128x128xbf16, #tpu.memory_space<vmem>>, vector<128x128xbf16>
    %c0_1 = arith.constant 0 : index
    %c0_2 = arith.constant 0 : index
    %1 = vector.load %arg2[%c0_1, %c0_2] : memref<128x128xbf16, #tpu.memory_space<vmem>>, vector<128x128xbf16>
    %cst = arith.constant dense<0.000000e+00> : vector<128x128xf32>
    %2 = tpu.matmul %0, %1, %cst {dimension_numbers = #tpu.dot_dimension_numbers<[1], [0], [0], [1], [0, 0, 1, 1], [], []>} : vector<128x128xbf16>, vector<128x128xbf16>, vector<128x128xf32> -> vector<128x128xf32>
    %3 = arith.truncf %2 : vector<128x128xf32> to vector<128x128xbf16>
    %c0_3 = arith.constant 0 : index
    %c0_4 = arith.constant 0 : index
    %4 = vector.load %arg4[%c0_3, %c0_4] : memref<128x128xbf16, #tpu.memory_space<vmem>>, vector<128x128xbf16>
    tpu.vector_store %arg4[%c0_3, %c0_4], %3 {strides = array<i32>} : memref<128x128xbf16, #tpu.memory_space<vmem>>, vector<128x128xbf16>,
    %5 = arith.extf %0 : vector<128x128xbf16> to vector<128x128xf32>
    %cst_5 = arith.constant 0.000000e+00 : f32
    %6 = vector.broadcast %cst_5 : f32 to vector<128x128xf32>
    %7 = arith.cmpf oge, %5, %6 : vector<128x128xf32>
    %cst_6 = arith.constant 0.00999999977 : f32
    %8 = vector.broadcast %cst_6 : f32 to vector<128x128xf32>
    %9 = arith.mulf %8, %5 : vector<128x128xf32>
    %10 = arith.select %7, %5, %9 : vector<128x128xi1>, vector<128x128xf32>
    %11 = arith.truncf %10 : vector<128x128xf32> to vector<128x128xbf16>
    %c0_7 = arith.constant 0 : index
    %c0_8 = arith.constant 0 : index
    %12 = vector.load %arg3[%c0_7, %c0_8] : memref<128x128xbf16, #tpu.memory_space<vmem>>, vector<128x128xbf16>
    %cst_9 = arith.constant dense<0.000000e+00> : vector<128x128xf32>
    %13 = tpu.matmul %11, %12, %cst_9 {dimension_numbers = #tpu.dot_dimension_numbers<[1], [0], [0], [1], [0, 0, 1, 1], [], []>} : vector<128x128xbf16>, vector<128x128xbf16>, vector<128x128xf32> -> vector<128x128xf32>
    %c0_10 = arith.constant 0 : index
    %c0_11 = arith.constant 0 : index
    %14 = vector.load %arg5[%c0_10, %c0_11] : memref<128x128xf32, #tpu.memory_space<vmem>>, vector<128x128xf32>
    tpu.vector_store %arg5[%c0_10, %c0_11], %13 {strides = array<i32>} : memref<128x128xf32, #tpu.memory_space<vmem>>, vector<128x128xf32>,
    return
  }
  func.func @transform_0(%arg0: i32) -> (i32, i32) {
    %c0_i32 = arith.constant 0 : i32
    %c0_i32_0 = arith.constant 0 : i32
    return %arg0, %c0_i32 : i32, i32
  }
  func.func @transform_1(%arg0: i32) -> (i32, i32) {
    %c0_i32 = arith.constant 0 : i32
    %c0_i32_0 = arith.constant 0 : i32
    %c0_i32_1 = arith.constant 0 : i32
    return %c0_i32, %c0_i32_0 : i32, i32
  }
  func.func @transform_2(%arg0: i32) -> (i32, i32) {
    %c0_i32 = arith.constant 0 : i32
    %c0_i32_0 = arith.constant 0 : i32
    %c0_i32_1 = arith.constant 0 : i32
    return %c0_i32, %c0_i32_0 : i32, i32
  }
  func.func @transform_3(%arg0: i32) -> (i32, i32) {
    %c0_i32 = arith.constant 0 : i32
    %c0_i32_0 = arith.constant 0 : i32
    return %arg0, %c0_i32 : i32, i32
  }
  func.func @transform_4(%arg0: i32) -> (i32, i32) {
    %c0_i32 = arith.constant 0 : i32
    %c0_i32_0 = arith.constant 0 : i32
    return %arg0, %c0_i32 : i32, i32
  }
}

module attributes {stable_mosaic.version = 11 : i64} {
  func.func @_gcn1_kernel(%arg0: i32, %arg1: i32, %arg2: memref<128x128xbf16, #tpu.memory_space<vmem>>, %arg3: memref<128x128xbf16, #tpu.memory_space<vmem>>, %arg4: memref<1x128xf32, #tpu.memory_space<vmem>>, %arg5: memref<128x128xf32, #tpu.memory_space<vmem>>, %arg6: memref<128x128xbf16, #tpu.memory_space<vmem>>, %arg7: memref<128x128xbf16, #tpu.memory_space<vmem>>, %arg8: memref<128x128xf32, #tpu.memory_space<vmem>>) attributes {dimension_semantics = [#tpu.dimension_semantics<parallel>, #tpu.dimension_semantics<arbitrary>], iteration_bounds = array<i64: 1, 1>, scalar_prefetch = 0 : i64, scratch_operands = 1 : i64, tpu.core_type = #tpu.core_type<tc>, window_params = [{transform_indices = @transform_0, window_bounds = array<i64: 128, 128>}, {pipeline_mode = #tpu.pipeline_mode<synchronous>, transform_indices = @transform_1, window_bounds = array<i64: 128, 128>}, {pipeline_mode = #tpu.pipeline_mode<synchronous>, transform_indices = @transform_2, window_bounds = array<i64: 1, 128>}, {transform_indices = @transform_3, window_bounds = array<i64: 128, 128>}, {pipeline_mode = #tpu.pipeline_mode<synchronous>, transform_indices = @transform_4, window_bounds = array<i64: 128, 128>}, {transform_indices = @transform_5, window_bounds = array<i64: 128, 128>}]} {
    %c0_i32 = arith.constant 0 : i32
    %0 = arith.cmpi eq, %arg1, %c0_i32 : i32
    %1 = arith.extui %0 : i1 to i32
    %c0_i32_0 = arith.constant 0 : i32
    %2 = arith.cmpi ne, %1, %c0_i32_0 : i32
    scf.if %2 {
      %cst_9 = arith.constant 0.000000e+00 : f32
      %15 = vector.broadcast %cst_9 : f32 to vector<128x128xf32>
      %c0_10 = arith.constant 0 : index
      %c0_11 = arith.constant 0 : index
      %16 = vector.load %arg8[%c0_10, %c0_11] : memref<128x128xf32, #tpu.memory_space<vmem>>, vector<128x128xf32>
      tpu.vector_store %arg8[%c0_10, %c0_11], %15 {strides = array<i32>} : memref<128x128xf32, #tpu.memory_space<vmem>>, vector<128x128xf32>,
    } else {
    }
    %c128_i32 = arith.constant 128 : i32
    %3 = arith.muli %arg1, %c128_i32 : i32
    %4 = tpu.assume_multiple %3, 128 : i32
    %5 = arith.index_cast %4 : i32 to index
    %c0 = arith.constant 0 : index
    %6 = vector.load %arg3[%5, %c0] : memref<128x128xbf16, #tpu.memory_space<vmem>>, vector<128x128xbf16>
    %c0_1 = arith.constant 0 : index
    %c0_2 = arith.constant 0 : index
    %7 = vector.load %arg8[%c0_1, %c0_2] : memref<128x128xf32, #tpu.memory_space<vmem>>, vector<128x128xf32>
    %c0_3 = arith.constant 0 : index
    %c0_4 = arith.constant 0 : index
    %8 = vector.load %arg2[%c0_3, %c0_4] : memref<128x128xbf16, #tpu.memory_space<vmem>>, vector<128x128xbf16>
    %cst = arith.constant dense<0.000000e+00> : vector<128x128xf32>
    %9 = tpu.matmul %8, %6, %cst {dimension_numbers = #tpu.dot_dimension_numbers<[1], [0], [0], [1], [0, 0, 1, 1], [], []>} : vector<128x128xbf16>, vector<128x128xbf16>, vector<128x128xf32> -> vector<128x128xf32>
    %10 = arith.addf %7, %9 : vector<128x128xf32>
    %c0_5 = arith.constant 0 : index
    %c0_6 = arith.constant 0 : index
    %11 = vector.load %arg8[%c0_5, %c0_6] : memref<128x128xf32, #tpu.memory_space<vmem>>, vector<128x128xf32>
    tpu.vector_store %arg8[%c0_5, %c0_6], %10 {strides = array<i32>} : memref<128x128xf32, #tpu.memory_space<vmem>>, vector<128x128xf32>,
    %c0_i32_7 = arith.constant 0 : i32
    %12 = arith.cmpi eq, %arg1, %c0_i32_7 : i32
    %13 = arith.extui %12 : i1 to i32
    %c0_i32_8 = arith.constant 0 : i32
    %14 = arith.cmpi ne, %13, %c0_i32_8 : i32
    scf.if %14 {
      %c0_9 = arith.constant 0 : index
      %c0_10 = arith.constant 0 : index
      %15 = vector.load %arg8[%c0_9, %c0_10] : memref<128x128xf32, #tpu.memory_space<vmem>>, vector<128x128xf32>
      %c0_11 = arith.constant 0 : index
      %c0_12 = arith.constant 0 : index
      %16 = vector.load %arg4[%c0_11, %c0_12] : memref<1x128xf32, #tpu.memory_space<vmem>>, vector<1x128xf32>
      %17 = vector.broadcast %16 : vector<1x128xf32> to vector<128x128xf32>
      %18 = arith.addf %15, %17 : vector<128x128xf32>
      %cst_13 = arith.constant 0.000000e+00 : f32
      %19 = vector.broadcast %cst_13 : f32 to vector<128x128xf32>
      %20 = arith.cmpf oge, %18, %19 : vector<128x128xf32>
      %cst_14 = arith.constant 0.00999999977 : f32
      %21 = vector.broadcast %cst_14 : f32 to vector<128x128xf32>
      %22 = arith.mulf %21, %18 : vector<128x128xf32>
      %23 = arith.select %20, %18, %22 : vector<128x128xi1>, vector<128x128xf32>
      %c0_15 = arith.constant 0 : index
      %c0_16 = arith.constant 0 : index
      %24 = vector.load %arg5[%c0_15, %c0_16] : memref<128x128xf32, #tpu.memory_space<vmem>>, vector<128x128xf32>
      %25 = arith.truncf %23 : vector<128x128xf32> to vector<128x128xbf16>
      %c0_17 = arith.constant 0 : index
      %c0_18 = arith.constant 0 : index
      %26 = vector.load %arg6[%c0_17, %c0_18] : memref<128x128xbf16, #tpu.memory_space<vmem>>, vector<128x128xbf16>
      %cst_19 = arith.constant dense<0.000000e+00> : vector<128x128xf32>
      %27 = tpu.matmul %25, %26, %cst_19 {dimension_numbers = #tpu.dot_dimension_numbers<[1], [0], [0], [1], [0, 0, 1, 1], [], []>} : vector<128x128xbf16>, vector<128x128xbf16>, vector<128x128xf32> -> vector<128x128xf32>
      %28 = arith.addf %24, %27 : vector<128x128xf32>
      %29 = arith.truncf %28 : vector<128x128xf32> to vector<128x128xbf16>
      %c0_20 = arith.constant 0 : index
      %c0_21 = arith.constant 0 : index
      %30 = vector.load %arg7[%c0_20, %c0_21] : memref<128x128xbf16, #tpu.memory_space<vmem>>, vector<128x128xbf16>
      tpu.vector_store %arg7[%c0_20, %c0_21], %29 {strides = array<i32>} : memref<128x128xbf16, #tpu.memory_space<vmem>>, vector<128x128xbf16>,
    } else {
    }
    return
  }
  func.func @transform_0(%arg0: i32, %arg1: i32) -> (i32, i32) {
    %c0_i32 = arith.constant 0 : i32
    return %arg0, %arg1 : i32, i32
  }
  func.func @transform_1(%arg0: i32, %arg1: i32) -> (i32, i32) {
    %c0_i32 = arith.constant 0 : i32
    %c0_i32_0 = arith.constant 0 : i32
    %c0_i32_1 = arith.constant 0 : i32
    return %c0_i32, %c0_i32_0 : i32, i32
  }
  func.func @transform_2(%arg0: i32, %arg1: i32) -> (i32, i32) {
    %c0_i32 = arith.constant 0 : i32
    %c0_i32_0 = arith.constant 0 : i32
    %c0_i32_1 = arith.constant 0 : i32
    return %c0_i32, %c0_i32_0 : i32, i32
  }
  func.func @transform_3(%arg0: i32, %arg1: i32) -> (i32, i32) {
    %c0_i32 = arith.constant 0 : i32
    %c0_i32_0 = arith.constant 0 : i32
    return %arg0, %c0_i32 : i32, i32
  }
  func.func @transform_4(%arg0: i32, %arg1: i32) -> (i32, i32) {
    %c0_i32 = arith.constant 0 : i32
    %c0_i32_0 = arith.constant 0 : i32
    %c0_i32_1 = arith.constant 0 : i32
    return %c0_i32, %c0_i32_0 : i32, i32
  }
  func.func @transform_5(%arg0: i32, %arg1: i32) -> (i32, i32) {
    %c0_i32 = arith.constant 0 : i32
    %c0_i32_0 = arith.constant 0 : i32
    return %arg0, %c0_i32 : i32, i32
  }
}

module attributes {stable_mosaic.version = 11 : i64} {
  func.func @_gcn2_kernel(%arg0: i32, %arg1: i32, %arg2: memref<128x128xbf16, #tpu.memory_space<vmem>>, %arg3: memref<128x128xbf16, #tpu.memory_space<vmem>>, %arg4: memref<1x128xf32, #tpu.memory_space<vmem>>, %arg5: memref<128x128xbf16, #tpu.memory_space<vmem>>, %arg6: memref<1x128xf32, #tpu.memory_space<vmem>>, %arg7: memref<128x128xbf16, #tpu.memory_space<vmem>>, %arg8: memref<128x128xf32, #tpu.memory_space<vmem>>, %arg9: memref<128x128xf32, #tpu.memory_space<vmem>>) attributes {dimension_semantics = [#tpu.dimension_semantics<parallel>, #tpu.dimension_semantics<arbitrary>], iteration_bounds = array<i64: 1, 1>, scalar_prefetch = 0 : i64, scratch_operands = 1 : i64, tpu.core_type = #tpu.core_type<tc>, window_params = [{transform_indices = @transform_0, window_bounds = array<i64: 128, 128>}, {pipeline_mode = #tpu.pipeline_mode<synchronous>, transform_indices = @transform_1, window_bounds = array<i64: 128, 128>}, {pipeline_mode = #tpu.pipeline_mode<synchronous>, transform_indices = @transform_2, window_bounds = array<i64: 1, 128>}, {pipeline_mode = #tpu.pipeline_mode<synchronous>, transform_indices = @transform_3, window_bounds = array<i64: 128, 128>}, {pipeline_mode = #tpu.pipeline_mode<synchronous>, transform_indices = @transform_4, window_bounds = array<i64: 1, 128>}, {transform_indices = @transform_5, window_bounds = array<i64: 128, 128>}, {transform_indices = @transform_6, window_bounds = array<i64: 128, 128>}]} {
    %c0_i32 = arith.constant 0 : i32
    %0 = arith.cmpi eq, %arg1, %c0_i32 : i32
    %1 = arith.extui %0 : i1 to i32
    %c0_i32_0 = arith.constant 0 : i32
    %2 = arith.cmpi ne, %1, %c0_i32_0 : i32
    scf.if %2 {
      %cst_9 = arith.constant 0.000000e+00 : f32
      %15 = vector.broadcast %cst_9 : f32 to vector<128x128xf32>
      %c0_10 = arith.constant 0 : index
      %c0_11 = arith.constant 0 : index
      %16 = vector.load %arg9[%c0_10, %c0_11] : memref<128x128xf32, #tpu.memory_space<vmem>>, vector<128x128xf32>
      tpu.vector_store %arg9[%c0_10, %c0_11], %15 {strides = array<i32>} : memref<128x128xf32, #tpu.memory_space<vmem>>, vector<128x128xf32>,
    } else {
    }
    %c128_i32 = arith.constant 128 : i32
    %3 = arith.muli %arg1, %c128_i32 : i32
    %4 = tpu.assume_multiple %3, 128 : i32
    %5 = arith.index_cast %4 : i32 to index
    %c0 = arith.constant 0 : index
    %6 = vector.load %arg3[%5, %c0] : memref<128x128xbf16, #tpu.memory_space<vmem>>, vector<128x128xbf16>
    %c0_1 = arith.constant 0 : index
    %c0_2 = arith.constant 0 : index
    %7 = vector.load %arg9[%c0_1, %c0_2] : memref<128x128xf32, #tpu.memory_space<vmem>>, vector<128x128xf32>
    %c0_3 = arith.constant 0 : index
    %c0_4 = arith.constant 0 : index
    %8 = vector.load %arg2[%c0_3, %c0_4] : memref<128x128xbf16, #tpu.memory_space<vmem>>, vector<128x128xbf16>
    %cst = arith.constant dense<0.000000e+00> : vector<128x128xf32>
    %9 = tpu.matmul %8, %6, %cst {dimension_numbers = #tpu.dot_dimension_numbers<[1], [0], [0], [1], [0, 0, 1, 1], [], []>} : vector<128x128xbf16>, vector<128x128xbf16>, vector<128x128xf32> -> vector<128x128xf32>
    %10 = arith.addf %7, %9 : vector<128x128xf32>
    %c0_5 = arith.constant 0 : index
    %c0_6 = arith.constant 0 : index
    %11 = vector.load %arg9[%c0_5, %c0_6] : memref<128x128xf32, #tpu.memory_space<vmem>>, vector<128x128xf32>
    tpu.vector_store %arg9[%c0_5, %c0_6], %10 {strides = array<i32>} : memref<128x128xf32, #tpu.memory_space<vmem>>, vector<128x128xf32>,
    %c0_i32_7 = arith.constant 0 : i32
    %12 = arith.cmpi eq, %arg1, %c0_i32_7 : i32
    %13 = arith.extui %12 : i1 to i32
    %c0_i32_8 = arith.constant 0 : i32
    %14 = arith.cmpi ne, %13, %c0_i32_8 : i32
    scf.if %14 {
      %c0_9 = arith.constant 0 : index
      %c0_10 = arith.constant 0 : index
      %15 = vector.load %arg9[%c0_9, %c0_10] : memref<128x128xf32, #tpu.memory_space<vmem>>, vector<128x128xf32>
      %c0_11 = arith.constant 0 : index
      %c0_12 = arith.constant 0 : index
      %16 = vector.load %arg4[%c0_11, %c0_12] : memref<1x128xf32, #tpu.memory_space<vmem>>, vector<1x128xf32>
      %17 = vector.broadcast %16 : vector<1x128xf32> to vector<128x128xf32>
      %18 = arith.addf %15, %17 : vector<128x128xf32>
      %cst_13 = arith.constant 0.000000e+00 : f32
      %19 = vector.broadcast %cst_13 : f32 to vector<128x128xf32>
      %20 = arith.cmpf oge, %18, %19 : vector<128x128xf32>
      %cst_14 = arith.constant 0.00999999977 : f32
      %21 = vector.broadcast %cst_14 : f32 to vector<128x128xf32>
      %22 = arith.mulf %21, %18 : vector<128x128xf32>
      %23 = arith.select %20, %18, %22 : vector<128x128xi1>, vector<128x128xf32>
      %24 = arith.truncf %23 : vector<128x128xf32> to vector<128x128xbf16>
      %c0_15 = arith.constant 0 : index
      %c0_16 = arith.constant 0 : index
      %25 = vector.load %arg7[%c0_15, %c0_16] : memref<128x128xbf16, #tpu.memory_space<vmem>>, vector<128x128xbf16>
      tpu.vector_store %arg7[%c0_15, %c0_16], %24 {strides = array<i32>} : memref<128x128xbf16, #tpu.memory_space<vmem>>, vector<128x128xbf16>,
      %26 = arith.truncf %23 : vector<128x128xf32> to vector<128x128xbf16>
      %c0_17 = arith.constant 0 : index
      %c0_18 = arith.constant 0 : index
      %27 = vector.load %arg5[%c0_17, %c0_18] : memref<128x128xbf16, #tpu.memory_space<vmem>>, vector<128x128xbf16>
      %cst_19 = arith.constant dense<0.000000e+00> : vector<128x128xf32>
      %28 = tpu.matmul %26, %27, %cst_19 {dimension_numbers = #tpu.dot_dimension_numbers<[1], [0], [0], [1], [0, 0, 1, 1], [], []>} : vector<128x128xbf16>, vector<128x128xbf16>, vector<128x128xf32> -> vector<128x128xf32>
      %c0_20 = arith.constant 0 : index
      %c0_21 = arith.constant 0 : index
      %29 = vector.load %arg6[%c0_20, %c0_21] : memref<1x128xf32, #tpu.memory_space<vmem>>, vector<1x128xf32>
      %30 = vector.broadcast %29 : vector<1x128xf32> to vector<128x128xf32>
      %31 = arith.addf %28, %30 : vector<128x128xf32>
      %c0_22 = arith.constant 0 : index
      %c0_23 = arith.constant 0 : index
      %32 = vector.load %arg8[%c0_22, %c0_23] : memref<128x128xf32, #tpu.memory_space<vmem>>, vector<128x128xf32>
      tpu.vector_store %arg8[%c0_22, %c0_23], %31 {strides = array<i32>} : memref<128x128xf32, #tpu.memory_space<vmem>>, vector<128x128xf32>,
    } else {
    }
    return
  }
  func.func @transform_0(%arg0: i32, %arg1: i32) -> (i32, i32) {
    %c0_i32 = arith.constant 0 : i32
    return %arg0, %arg1 : i32, i32
  }
  func.func @transform_1(%arg0: i32, %arg1: i32) -> (i32, i32) {
    %c0_i32 = arith.constant 0 : i32
    %c0_i32_0 = arith.constant 0 : i32
    %c0_i32_1 = arith.constant 0 : i32
    return %c0_i32, %c0_i32_0 : i32, i32
  }
  func.func @transform_2(%arg0: i32, %arg1: i32) -> (i32, i32) {
    %c0_i32 = arith.constant 0 : i32
    %c0_i32_0 = arith.constant 0 : i32
    %c0_i32_1 = arith.constant 0 : i32
    return %c0_i32, %c0_i32_0 : i32, i32
  }
  func.func @transform_3(%arg0: i32, %arg1: i32) -> (i32, i32) {
    %c0_i32 = arith.constant 0 : i32
    %c0_i32_0 = arith.constant 0 : i32
    %c0_i32_1 = arith.constant 0 : i32
    return %c0_i32, %c0_i32_0 : i32, i32
  }
  func.func @transform_4(%arg0: i32, %arg1: i32) -> (i32, i32) {
    %c0_i32 = arith.constant 0 : i32
    %c0_i32_0 = arith.constant 0 : i32
    %c0_i32_1 = arith.constant 0 : i32
    return %c0_i32, %c0_i32_0 : i32, i32
  }
  func.func @transform_5(%arg0: i32, %arg1: i32) -> (i32, i32) {
    %c0_i32 = arith.constant 0 : i32
    %c0_i32_0 = arith.constant 0 : i32
    return %arg0, %c0_i32 : i32, i32
  }
  func.func @transform_6(%arg0: i32, %arg1: i32) -> (i32, i32) {
    %c0_i32 = arith.constant 0 : i32
    %c0_i32_0 = arith.constant 0 : i32
    return %arg0, %c0_i32 : i32, i32
  }
}

</mosaic_0001>

<llo_original>
// kernel: gnn_forward.4
$region0: #{gnn_forward.4}
  #allocation0 [shape = 'u32[]', space=smem, size = 0x4, offset = 0x4, fixed_abs, tag = 'smem constant byte address 0x4 - core index']
  #allocation1 [shape = 'u32[144,128]{1,0:T(1,128)}', space=vmem, size = 0x12000, scoped, tag = 'internal scratch']
  #allocation2 [shape = 'f32[128,128]{1,0:T(8,128)}', space=vmem, size = 0x10000, scoped, tag = 'scratch operand']
  %s0 = inlined_call_operand.vmem [shape: bf16[128,128], index: 0, kind: input, shape index: {}]
  %s1 = inlined_call_operand.vmem [shape: bf16[128,128], index: 1, kind: input, shape index: {}]
  %s2 = inlined_call_operand.vmem [shape: f32[1,128], index: 2, kind: input, shape index: {}]
  %s3 = inlined_call_operand.vmem [shape: f32[128,128], index: 3, kind: input, shape index: {}]
  %s4 = inlined_call_operand.vmem [shape: bf16[128,128], index: 4, kind: input, shape index: {}]
  %s5 = inlined_call_operand.vmem [shape: bf16[128,128], index: 5, kind: output, shape index: {}]
  %s6 = sld [smem:[#allocation0]]
  $region38: #{gnn_forward.4} parent=0
    _
  %s8 = ssub.s32 1, %s6
  %s9 = scalar_select 0, %s8, %s6
  // Predicated region
  $region2: #{gnn_forward.4} parent=0 // pred_check
    _
  $region3: #{gnn_forward.4} parent=0 // pred_check_branch
    %11 = sbr.rel (0) target = $region5
  $region4: #{gnn_forward.4} parent=0 // pred_region
    _
  $region5: #{gnn_forward.4} parent=0 // pred_fallthru
    _
  // Predicated region
  $region6: #{gnn_forward.4} parent=0 // pred_check
    _
  $region7: #{gnn_forward.4} parent=0 // pred_check_branch
    %13 = sbr.rel (0) target = $region9
  $region8: #{gnn_forward.4} parent=0 // pred_region
    _
  $region9: #{gnn_forward.4} parent=0 // pred_fallthru
    _
  // Predicated region
  $region10: #{gnn_forward.4} parent=0 // pred_check
    _
  $region11: #{gnn_forward.4} parent=0 // pred_check_branch
    %15 = sbr.rel (0) target = $region13
  $region12: #{gnn_forward.4} parent=0 // pred_region
    _
  $region13: #{gnn_forward.4} parent=0 // pred_fallthru
    _
  // Predicated region
  $region14: #{gnn_forward.4} parent=0 // pred_check
    _
  $region15: #{gnn_forward.4} parent=0 // pred_check_branch
    %17 = sbr.rel (0) target = $region17
  $region16: #{gnn_forward.4} parent=0 // pred_region
    _
  $region17: #{gnn_forward.4} parent=0 // pred_fallthru
    _
  // Predicated region
  $region18: #{gnn_forward.4} parent=0 // pred_check
    _
  $region19: #{gnn_forward.4} parent=0 // pred_check_branch
    %19 = sbr.rel (0) target = $region21
  $region20: #{gnn_forward.4} parent=0 // pred_region
    _
  $region21: #{gnn_forward.4} parent=0 // pred_fallthru
    _
  %p21 = scmp.eq.s32.totalorder 0, 0
  // Predicated region
  $region22: #{gnn_forward.4} parent=0 // pred_check
    %p22 = pneg %p21
  $region23: #{gnn_forward.4} parent=0 // pred_check_branch
    %24 = sbr.rel (%p22) target = $region25
  $region24: #{gnn_forward.4} parent=0 // pred_region
    %25 = vst [vmem:[#allocation2] sm:$0xff] 0.0
    %26 = vst [vmem:[#allocation2 + $0x8] sm:$0xff] 0.0
    %27 = vst [vmem:[#allocation2 + $0x10] sm:$0xff] 0.0
    %28 = vst [vmem:[#allocation2 + $0x18] sm:$0xff] 0.0
    %29 = vst [vmem:[#allocation2 + $0x20] sm:$0xff] 0.0
    %30 = vst [vmem:[#allocation2 + $0x28] sm:$0xff] 0.0
    %31 = vst [vmem:[#allocation2 + $0x30] sm:$0xff] 0.0
    %32 = vst [vmem:[#allocation2 + $0x38] sm:$0xff] 0.0
    %33 = vst [vmem:[#allocation2 + $0x40] sm:$0xff] 0.0
    %34 = vst [vmem:[#allocation2 + $0x48] sm:$0xff] 0.0
    %35 = vst [vmem:[#allocation2 + $0x50] sm:$0xff] 0.0
    %36 = vst [vmem:[#allocation2 + $0x58] sm:$0xff] 0.0
    %37 = vst [vmem:[#allocation2 + $0x60] sm:$0xff] 0.0
    %38 = vst [vmem:[#allocation2 + $0x68] sm:$0xff] 0.0
    %39 = vst [vmem:[#allocation2 + $0x70] sm:$0xff] 0.0
    %40 = vst [vmem:[#allocation2 + $0x78] sm:$0xff] 0.0
  $region25: #{gnn_forward.4} parent=0 // pred_fallthru
    _
  %s41 = smul.u32 0, 128
  %s42 = sshra.s32 %s41, 3
  %s43 = sand.u32 %s41, 7
  %s44 = smul.addr %s42, 4
  %s45 = scalar_lea.vmem %s1, %s44
  %v46 = vld [vmem:[%s45] sm:$0xf]
  %v47 = vld [vmem:[%s45 + $0x4] sm:$0xf]
  %v48 = vld [vmem:[%s45 + $0x8] sm:$0xf]
  %v49 = vld [vmem:[%s45 + $0xc] sm:$0xf]
  %v50 = vld [vmem:[%s45 + $0x10] sm:$0xf]
  %v51 = vld [vmem:[%s45 + $0x14] sm:$0xf]
  %v52 = vld [vmem:[%s45 + $0x18] sm:$0xf]
  %v53 = vld [vmem:[%s45 + $0x1c] sm:$0xf]
  %v54 = vld [vmem:[%s45 + $0x20] sm:$0xf]
  %v55 = vld [vmem:[%s45 + $0x24] sm:$0xf]
  %v56 = vld [vmem:[%s45 + $0x28] sm:$0xf]
  %v57 = vld [vmem:[%s45 + $0x2c] sm:$0xf]
  %v58 = vld [vmem:[%s45 + $0x30] sm:$0xf]
  %v59 = vld [vmem:[%s45 + $0x34] sm:$0xf]
  %v60 = vld [vmem:[%s45 + $0x38] sm:$0xf]
  %v61 = vld [vmem:[%s45 + $0x3c] sm:$0xf]
  %v62 = vld [vmem:[#allocation2] sm:$0xff]
  %v63 = vld [vmem:[#allocation2 + $0x8] sm:$0xff]
  %v64 = vld [vmem:[#allocation2 + $0x10] sm:$0xff]
  %v65 = vld [vmem:[#allocation2 + $0x18] sm:$0xff]
  %v66 = vld [vmem:[#allocation2 + $0x20] sm:$0xff]
  %v67 = vld [vmem:[#allocation2 + $0x28] sm:$0xff]
  %v68 = vld [vmem:[#allocation2 + $0x30] sm:$0xff]
  %v69 = vld [vmem:[#allocation2 + $0x38] sm:$0xff]
  %v70 = vld [vmem:[#allocation2 + $0x40] sm:$0xff]
  %v71 = vld [vmem:[#allocation2 + $0x48] sm:$0xff]
  %v72 = vld [vmem:[#allocation2 + $0x50] sm:$0xff]
  %v73 = vld [vmem:[#allocation2 + $0x58] sm:$0xff]
  %v74 = vld [vmem:[#allocation2 + $0x60] sm:$0xff]
  %v75 = vld [vmem:[#allocation2 + $0x68] sm:$0xff]
  %v76 = vld [vmem:[#allocation2 + $0x70] sm:$0xff]
  %v77 = vld [vmem:[#allocation2 + $0x78] sm:$0xff]
  %v78 = vld [vmem:[%s0] sm:$0xf]
  %v79 = vld [vmem:[%s0 + $0x4] sm:$0xf]
  %v80 = vld [vmem:[%s0 + $0x8] sm:$0xf]
  %v81 = vld [vmem:[%s0 + $0xc] sm:$0xf]
  %v82 = vld [vmem:[%s0 + $0x10] sm:$0xf]
  %v83 = vld [vmem:[%s0 + $0x14] sm:$0xf]
  %v84 = vld [vmem:[%s0 + $0x18] sm:$0xf]
  %v85 = vld [vmem:[%s0 + $0x1c] sm:$0xf]
  %v86 = vld [vmem:[%s0 + $0x20] sm:$0xf]
  %v87 = vld [vmem:[%s0 + $0x24] sm:$0xf]
  %v88 = vld [vmem:[%s0 + $0x28] sm:$0xf]
  %v89 = vld [vmem:[%s0 + $0x2c] sm:$0xf]
  %v90 = vld [vmem:[%s0 + $0x30] sm:$0xf]
  %v91 = vld [vmem:[%s0 + $0x34] sm:$0xf]
  %v92 = vld [vmem:[%s0 + $0x38] sm:$0xf]
  %v93 = vld [vmem:[%s0 + $0x3c] sm:$0xf]
  %v110 = vunpack.c.l.b16 %v78
  %v111 = vunpack.c.l.b16 %v79
  %v112 = vunpack.c.l.b16 %v80
  %v113 = vunpack.c.l.b16 %v81
  %v114 = vunpack.c.l.b16 %v82
  %v115 = vunpack.c.l.b16 %v83
  %v116 = vunpack.c.l.b16 %v84
  %v117 = vunpack.c.l.b16 %v85
  %v118 = vunpack.c.l.b16 %v86
  %v119 = vunpack.c.l.b16 %v87
  %v120 = vunpack.c.l.b16 %v88
  %v121 = vunpack.c.l.b16 %v89
  %v122 = vunpack.c.l.b16 %v90
  %v123 = vunpack.c.l.b16 %v91
  %v124 = vunpack.c.l.b16 %v92
  %v125 = vunpack.c.l.b16 %v93
  %v126 = vpack.c.b16 %v111, %v110
  %v127 = vpack.c.b16 %v113, %v112
  %v128 = vpack.c.b16 %v115, %v114
  %v129 = vpack.c.b16 %v117, %v116
  %v130 = vpack.c.b16 %v119, %v118
  %v131 = vpack.c.b16 %v121, %v120
  %v132 = vpack.c.b16 %v123, %v122
  %v133 = vpack.c.b16 %v125, %v124
  %v158 = vunpack.c.l.b16 %v46
  %v159 = vunpack.c.l.b16 %v47
  %v160 = vunpack.c.l.b16 %v48
  %v161 = vunpack.c.l.b16 %v49
  %v162 = vunpack.c.l.b16 %v50
  %v163 = vunpack.c.l.b16 %v51
  %v164 = vunpack.c.l.b16 %v52
  %v165 = vunpack.c.l.b16 %v53
  %v166 = vunpack.c.l.b16 %v54
  %v167 = vunpack.c.l.b16 %v55
  %v168 = vunpack.c.l.b16 %v56
  %v169 = vunpack.c.l.b16 %v57
  %v170 = vunpack.c.l.b16 %v58
  %v171 = vunpack.c.l.b16 %v59
  %v172 = vunpack.c.l.b16 %v60
  %v173 = vunpack.c.l.b16 %v61
  %v174 = vpack.c.b16 %v159, %v158
  %v175 = vpack.c.b16 %v161, %v160
  %v176 = vpack.c.b16 %v163, %v162
  %v177 = vpack.c.b16 %v165, %v164
  %v178 = vpack.c.b16 %v167, %v166
  %v179 = vpack.c.b16 %v169, %v168
  %v180 = vpack.c.b16 %v171, %v170
  %v181 = vpack.c.b16 %v173, %v172
  %190 = vmatprep.subr.bf16.mxu0 0
  %191 = vmatpush1.bf16.msra.mxu0 %v174
  %192 = vmatprep.subr.bf16.mxu0 0
  %193 = vmatpush1.bf16.msra.mxu0 %v175
  %194 = vmatprep.subr.bf16.mxu0 0
  %195 = vmatpush1.bf16.msra.mxu0 %v176
  %196 = vmatprep.subr.bf16.mxu0 0
  %197 = vmatpush1.bf16.msra.mxu0 %v177
  %198 = vmatprep.subr.bf16.mxu0 0
  %199 = vmatpush1.bf16.msra.mxu0 %v178
  %200 = vmatprep.subr.bf16.mxu0 0
  %201 = vmatpush1.bf16.msra.mxu0 %v179
  %202 = vmatprep.subr.bf16.mxu0 0
  %203 = vmatpush1.bf16.msra.mxu0 %v180
  %204 = vmatprep.subr.bf16.mxu0 0
  %205 = vmatpush1.bf16.msra.mxu0 %v181
  %206 = vmatprep.subr.bf16.mxu0 0
  %207 = vmatpush1.bf16.msra.mxu0 0
  %208 = vmatprep.subr.bf16.mxu0 0
  %209 = vmatpush1.bf16.msra.mxu0 0
  %210 = vmatprep.subr.bf16.mxu0 0
  %211 = vmatpush1.bf16.msra.mxu0 0
  %212 = vmatprep.subr.bf16.mxu0 0
  %213 = vmatpush1.bf16.msra.mxu0 0
  %214 = vmatprep.subr.bf16.mxu0 0
  %215 = vmatpush1.bf16.msra.mxu0 0
  %216 = vmatprep.subr.bf16.mxu0 0
  %217 = vmatpush1.bf16.msra.mxu0 0
  %218 = vmatprep.subr.bf16.mxu0 0
  %219 = vmatpush1.bf16.msra.mxu0 0
  %220 = vmatprep.subr.bf16.mxu0 0
  %221 = vmatpush1.bf16.msra.mxu0 0
  %222 = vmatprep.mubr.bf16.mxu0 0
  %223 = vmatmul.mubr.bf16.gmra.mrb[0].mxu0 %v126
  %v224 = vpop.f32.mrb[0].mxu0
  %v225 = vadd.f32 0.0, %v224
  %v226 = vpop.f32.mrb[0].mxu0
  %v227 = vpop.f32.mrb[0].mxu0
  %v228 = vadd.f32 0.0, %v227
  %v229 = vpop.f32.mrb[0].mxu0
  %230 = vmatprep.mubr.bf16.mxu0 0
  %231 = vmatmul.mubr.bf16.gmra.mrb[0].mxu0 %v127
  %v232 = vpop.f32.mrb[0].mxu0
  %v233 = vadd.f32 0.0, %v232
  %v234 = vpop.f32.mrb[0].mxu0
  %v235 = vpop.f32.mrb[0].mxu0
  %v236 = vadd.f32 0.0, %v235
  %v237 = vpop.f32.mrb[0].mxu0
  %238 = vmatprep.mubr.bf16.mxu0 0
  %239 = vmatmul.mubr.bf16.gmra.mrb[0].mxu0 %v128
  %v240 = vpop.f32.mrb[0].mxu0
  %v241 = vadd.f32 0.0, %v240
  %v242 = vpop.f32.mrb[0].mxu0
  %v243 = vpop.f32.mrb[0].mxu0
  %v244 = vadd.f32 0.0, %v243
  %v245 = vpop.f32.mrb[0].mxu0
  %246 = vmatprep.mubr.bf16.mxu0 0
  %247 = vmatmul.mubr.bf16.gmra.mrb[0].mxu0 %v129
  %v248 = vpop.f32.mrb[0].mxu0
  %v249 = vadd.f32 0.0, %v248
  %v250 = vpop.f32.mrb[0].mxu0
  %v251 = vpop.f32.mrb[0].mxu0
  %v252 = vadd.f32 0.0, %v251
  %v253 = vpop.f32.mrb[0].mxu0
  %254 = vmatprep.mubr.bf16.mxu0 0
  %255 = vmatmul.mubr.bf16.gmra.mrb[0].mxu0 %v130
  %v256 = vpop.f32.mrb[0].mxu0
  %v257 = vadd.f32 0.0, %v256
  %v258 = vpop.f32.mrb[0].mxu0
  %v259 = vpop.f32.mrb[0].mxu0
  %v260 = vadd.f32 0.0, %v259
  %v261 = vpop.f32.mrb[0].mxu0
  %262 = vmatprep.mubr.bf16.mxu0 0
  %263 = vmatmul.mubr.bf16.gmra.mrb[0].mxu0 %v131
  %v264 = vpop.f32.mrb[0].mxu0
  %v265 = vadd.f32 0.0, %v264
  %v266 = vpop.f32.mrb[0].mxu0
  %v267 = vpop.f32.mrb[0].mxu0
  %v268 = vadd.f32 0.0, %v267
  %v269 = vpop.f32.mrb[0].mxu0
  %270 = vmatprep.mubr.bf16.mxu0 0
  %271 = vmatmul.mubr.bf16.gmra.mrb[0].mxu0 %v132
  %v272 = vpop.f32.mrb[0].mxu0
  %v273 = vadd.f32 0.0, %v272
  %v274 = vpop.f32.mrb[0].mxu0
  %v275 = vpop.f32.mrb[0].mxu0
  %v276 = vadd.f32 0.0, %v275
  %v277 = vpop.f32.mrb[0].mxu0
  %278 = vmatprep.mubr.bf16.mxu0 0
  %279 = vmatmul.mubr.bf16.gmra.mrb[0].mxu0 %v133
  %v280 = vpop.f32.mrb[0].mxu0
  %v281 = vadd.f32 0.0, %v280
  %v282 = vpop.f32.mrb[0].mxu0
  %v283 = vpop.f32.mrb[0].mxu0
  %v284 = vadd.f32 0.0, %v283
  %v285 = vpop.f32.mrb[0].mxu0
  %286 = vdwg.mxu0
  %v287 = vadd.f32 %v62, %v225
  %v288 = vadd.f32 %v63, %v228
  %v289 = vadd.f32 %v64, %v233
  %v290 = vadd.f32 %v65, %v236
  %v291 = vadd.f32 %v66, %v241
  %v292 = vadd.f32 %v67, %v244
  %v293 = vadd.f32 %v68, %v249
  %v294 = vadd.f32 %v69, %v252
  %v295 = vadd.f32 %v70, %v257
  %v296 = vadd.f32 %v71, %v260
  %v297 = vadd.f32 %v72, %v265
  %v298 = vadd.f32 %v73, %v268
  %v299 = vadd.f32 %v74, %v273
  %v300 = vadd.f32 %v75, %v276
  %v301 = vadd.f32 %v76, %v281
  %v302 = vadd.f32 %v77, %v284
  %303 = vst [vmem:[#allocation2] sm:$0xff] %v287
  %304 = vst [vmem:[#allocation2 + $0x8] sm:$0xff] %v288
  %305 = vst [vmem:[#allocation2 + $0x10] sm:$0xff] %v289
  %306 = vst [vmem:[#allocation2 + $0x18] sm:$0xff] %v290
  %307 = vst [vmem:[#allocation2 + $0x20] sm:$0xff] %v291
  %308 = vst [vmem:[#allocation2 + $0x28] sm:$0xff] %v292
  %309 = vst [vmem:[#allocation2 + $0x30] sm:$0xff] %v293
  %310 = vst [vmem:[#allocation2 + $0x38] sm:$0xff] %v294
  %311 = vst [vmem:[#allocation2 + $0x40] sm:$0xff] %v295
  %312 = vst [vmem:[#allocation2 + $0x48] sm:$0xff] %v296
  %313 = vst [vmem:[#allocation2 + $0x50] sm:$0xff] %v297
  %314 = vst [vmem:[#allocation2 + $0x58] sm:$0xff] %v298
  %315 = vst [vmem:[#allocation2 + $0x60] sm:$0xff] %v299
  %316 = vst [vmem:[#allocation2 + $0x68] sm:$0xff] %v300
  %317 = vst [vmem:[#allocation2 + $0x70] sm:$0xff] %v301
  %318 = vst [vmem:[#allocation2 + $0x78] sm:$0xff] %v302
  // Predicated region
  $region26: #{gnn_forward.4} parent=0 // pred_check
    %p319 = pneg %p21
  $region27: #{gnn_forward.4} parent=0 // pred_check_branch
    %321 = sbr.rel (%p319) target = $region29
  $region28: #{gnn_forward.4} parent=0 // pred_region
    %v322 = vld [vmem:[#allocation2] sm:$0xff]
    %v323 = vld [vmem:[#allocation2 + $0x8] sm:$0xff]
    %v324 = vld [vmem:[#allocation2 + $0x10] sm:$0xff]
    %v325 = vld [vmem:[#allocation2 + $0x18] sm:$0xff]
    %v326 = vld [vmem:[#allocation2 + $0x20] sm:$0xff]
    %v327 = vld [vmem:[#allocation2 + $0x28] sm:$0xff]
    %v328 = vld [vmem:[#allocation2 + $0x30] sm:$0xff]
    %v329 = vld [vmem:[#allocation2 + $0x38] sm:$0xff]
    %v330 = vld [vmem:[#allocation2 + $0x40] sm:$0xff]
    %v331 = vld [vmem:[#allocation2 + $0x48] sm:$0xff]
    %v332 = vld [vmem:[#allocation2 + $0x50] sm:$0xff]
    %v333 = vld [vmem:[#allocation2 + $0x58] sm:$0xff]
    %v334 = vld [vmem:[#allocation2 + $0x60] sm:$0xff]
    %v335 = vld [vmem:[#allocation2 + $0x68] sm:$0xff]
    %v336 = vld [vmem:[#allocation2 + $0x70] sm:$0xff]
    %v337 = vld [vmem:[#allocation2 + $0x78] sm:$0xff]
    %v338 = vld [vmem:[%s2] sm:$0x1]
    %v340 = vlaneseq
    %v341 = vshrl.u32 %v340, 7
    %v342 = vsub.s32 0, %v341
    %v343 = vrot.slane %v338, %v342
    %v345 = vadd.f32 %v322, %v343
    %v346 = vadd.f32 %v323, %v343
    %v347 = vadd.f32 %v324, %v343
    %v348 = vadd.f32 %v325, %v343
    %v349 = vadd.f32 %v326, %v343
    %v350 = vadd.f32 %v327, %v343
    %v351 = vadd.f32 %v328, %v343
    %v352 = vadd.f32 %v329, %v343
    %v353 = vadd.f32 %v330, %v343
    %v354 = vadd.f32 %v331, %v343
    %v355 = vadd.f32 %v332, %v343
    %v356 = vadd.f32 %v333, %v343
    %v357 = vadd.f32 %v334, %v343
    %v358 = vadd.f32 %v335, %v343
    %v359 = vadd.f32 %v336, %v343
    %v360 = vadd.f32 %v337, %v343
    %vm361 = vcmp.ge.f32.partialorder %v345, 0.0
    %vm362 = vcmp.ge.f32.partialorder %v346, 0.0
    %vm363 = vcmp.ge.f32.partialorder %v347, 0.0
    %vm364 = vcmp.ge.f32.partialorder %v348, 0.0
    %vm365 = vcmp.ge.f32.partialorder %v349, 0.0
    %vm366 = vcmp.ge.f32.partialorder %v350, 0.0
    %vm367 = vcmp.ge.f32.partialorder %v351, 0.0
    %vm368 = vcmp.ge.f32.partialorder %v352, 0.0
    %vm369 = vcmp.ge.f32.partialorder %v353, 0.0
    %vm370 = vcmp.ge.f32.partialorder %v354, 0.0
    %vm371 = vcmp.ge.f32.partialorder %v355, 0.0
    %vm372 = vcmp.ge.f32.partialorder %v356, 0.0
    %vm373 = vcmp.ge.f32.partialorder %v357, 0.0
    %vm374 = vcmp.ge.f32.partialorder %v358, 0.0
    %vm375 = vcmp.ge.f32.partialorder %v359, 0.0
    %vm376 = vcmp.ge.f32.partialorder %v360, 0.0
    %v377 = vmul.f32 %v345, 0.01
    %v378 = vmul.f32 %v346, 0.01
    %v379 = vmul.f32 %v347, 0.01
    %v380 = vmul.f32 %v348, 0.01
    %v381 = vmul.f32 %v349, 0.01
    %v382 = vmul.f32 %v350, 0.01
    %v383 = vmul.f32 %v351, 0.01
    %v384 = vmul.f32 %v352, 0.01
    %v385 = vmul.f32 %v353, 0.01
    %v386 = vmul.f32 %v354, 0.01
    %v387 = vmul.f32 %v355, 0.01
    %v388 = vmul.f32 %v356, 0.01
    %v389 = vmul.f32 %v357, 0.01
    %v390 = vmul.f32 %v358, 0.01
    %v391 = vmul.f32 %v359, 0.01
    %v392 = vmul.f32 %v360, 0.01
    %v393 = vsel %vm361, %v345, %v377
    %v394 = vsel %vm362, %v346, %v378
    %v395 = vsel %vm363, %v347, %v379
    %v396 = vsel %vm364, %v348, %v380
    %v397 = vsel %vm365, %v349, %v381
    %v398 = vsel %vm366, %v350, %v382
    %v399 = vsel %vm367, %v351, %v383
    %v400 = vsel %vm368, %v352, %v384
    %v401 = vsel %vm369, %v353, %v385
    %v402 = vsel %vm370, %v354, %v386
    %v403 = vsel %vm371, %v355, %v387
    %v404 = vsel %vm372, %v356, %v388
    %v405 = vsel %vm373, %v357, %v389
    %v406 = vsel %vm374, %v358, %v390
    %v407 = vsel %vm375, %v359, %v391
    %v408 = vsel %vm376, %v360, %v392
    %v409 = vld [vmem:[%s3] sm:$0xff]
    %v410 = vld [vmem:[%s3 + $0x8] sm:$0xff]
    %v411 = vld [vmem:[%s3 + $0x10] sm:$0xff]
    %v412 = vld [vmem:[%s3 + $0x18] sm:$0xff]
    %v413 = vld [vmem:[%s3 + $0x20] sm:$0xff]
    %v414 = vld [vmem:[%s3 + $0x28] sm:$0xff]
    %v415 = vld [vmem:[%s3 + $0x30] sm:$0xff]
    %v416 = vld [vmem:[%s3 + $0x38] sm:$0xff]
    %v417 = vld [vmem:[%s3 + $0x40] sm:$0xff]
    %v418 = vld [vmem:[%s3 + $0x48] sm:$0xff]
    %v419 = vld [vmem:[%s3 + $0x50] sm:$0xff]
    %v420 = vld [vmem:[%s3 + $0x58] sm:$0xff]
    %v421 = vld [vmem:[%s3 + $0x60] sm:$0xff]
    %v422 = vld [vmem:[%s3 + $0x68] sm:$0xff]
    %v423 = vld [vmem:[%s3 + $0x70] sm:$0xff]
    %v424 = vld [vmem:[%s3 + $0x78] sm:$0xff]
    %v425 = vpack.c.bf16 %v394, %v393
    %v426 = vpack.c.bf16 %v396, %v395
    %v427 = vpack.c.bf16 %v398, %v397
    %v428 = vpack.c.bf16 %v400, %v399
    %v429 = vpack.c.bf16 %v402, %v401
    %v430 = vpack.c.bf16 %v404, %v403
    %v431 = vpack.c.bf16 %v406, %v405
    %v432 = vpack.c.bf16 %v408, %v407
    %v433 = vld [vmem:[%s4] sm:$0xf]
    %v434 = vld [vmem:[%s4 + $0x4] sm:$0xf]
    %v435 = vld [vmem:[%s4 + $0x8] sm:$0xf]
    %v436 = vld [vmem:[%s4 + $0xc] sm:$0xf]
    %v437 = vld [vmem:[%s4 + $0x10] sm:$0xf]
    %v438 = vld [vmem:[%s4 + $0x14] sm:$0xf]
    %v439 = vld [vmem:[%s4 + $0x18] sm:$0xf]
    %v440 = vld [vmem:[%s4 + $0x1c] sm:$0xf]
    %v441 = vld [vmem:[%s4 + $0x20] sm:$0xf]
    %v442 = vld [vmem:[%s4 + $0x24] sm:$0xf]
    %v443 = vld [vmem:[%s4 + $0x28] sm:$0xf]
    %v444 = vld [vmem:[%s4 + $0x2c] sm:$0xf]
    %v445 = vld [vmem:[%s4 + $0x30] sm:$0xf]
    %v446 = vld [vmem:[%s4 + $0x34] sm:$0xf]
    %v447 = vld [vmem:[%s4 + $0x38] sm:$0xf]
    %v448 = vld [vmem:[%s4 + $0x3c] sm:$0xf]
    %v465 = vunpack.c.l.b16 %v433
    %v466 = vunpack.c.l.b16 %v434
    %v467 = vunpack.c.l.b16 %v435
    %v468 = vunpack.c.l.b16 %v436
    %v469 = vunpack.c.l.b16 %v437
    %v470 = vunpack.c.l.b16 %v438
    %v471 = vunpack.c.l.b16 %v439
    %v472 = vunpack.c.l.b16 %v440
    %v473 = vunpack.c.l.b16 %v441
    %v474 = vunpack.c.l.b16 %v442
    %v475 = vunpack.c.l.b16 %v443
    %v476 = vunpack.c.l.b16 %v444
    %v477 = vunpack.c.l.b16 %v445
    %v478 = vunpack.c.l.b16 %v446
    %v479 = vunpack.c.l.b16 %v447
    %v480 = vunpack.c.l.b16 %v448
    %v481 = vpack.c.b16 %v466, %v465
    %v482 = vpack.c.b16 %v468, %v467
    %v483 = vpack.c.b16 %v470, %v469
    %v484 = vpack.c.b16 %v472, %v471
    %v485 = vpack.c.b16 %v474, %v473
    %v486 = vpack.c.b16 %v476, %v475
    %v487 = vpack.c.b16 %v478, %v477
    %v488 = vpack.c.b16 %v480, %v479
    %497 = vmatprep.subr.bf16.mxu0 0
    %498 = vmatpush1.bf16.msra.mxu0 %v481
    %499 = vmatprep.subr.bf16.mxu0 0
    %500 = vmatpush1.bf16.msra.mxu0 %v482
    %501 = vmatprep.subr.bf16.mxu0 0
    %502 = vmatpush1.bf16.msra.mxu0 %v483
    %503 = vmatprep.subr.bf16.mxu0 0
    %504 = vmatpush1.bf16.msra.mxu0 %v484
    %505 = vmatprep.subr.bf16.mxu0 0
    %506 = vmatpush1.bf16.msra.mxu0 %v485
    %507 = vmatprep.subr.bf16.mxu0 0
    %508 = vmatpush1.bf16.msra.mxu0 %v486
    %509 = vmatprep.subr.bf16.mxu0 0
    %510 = vmatpush1.bf16.msra.mxu0 %v487
    %511 = vmatprep.subr.bf16.mxu0 0
    %512 = vmatpush1.bf16.msra.mxu0 %v488
    %513 = vmatprep.subr.bf16.mxu0 0
    %514 = vmatpush1.bf16.msra.mxu0 0
    %515 = vmatprep.subr.bf16.mxu0 0
    %516 = vmatpush1.bf16.msra.mxu0 0
    %517 = vmatprep.subr.bf16.mxu0 0
    %518 = vmatpush1.bf16.msra.mxu0 0
    %519 = vmatprep.subr.bf16.mxu0 0
    %520 = vmatpush1.bf16.msra.mxu0 0
    %521 = vmatprep.subr.bf16.mxu0 0
    %522 = vmatpush1.bf16.msra.mxu0 0
    %523 = vmatprep.subr.bf16.mxu0 0
    %524 = vmatpush1.bf16.msra.mxu0 0
    %525 = vmatprep.subr.bf16.mxu0 0
    %526 = vmatpush1.bf16.msra.mxu0 0
    %527 = vmatprep.subr.bf16.mxu0 0
    %528 = vmatpush1.bf16.msra.mxu0 0
    %529 = vmatprep.mubr.bf16.mxu0 0
    %530 = vmatmul.mubr.bf16.gmra.mrb[0].mxu0 %v425
    %v531 = vpop.f32.mrb[0].mxu0
    %v532 = vadd.f32 0.0, %v531
    %v533 = vpop.f32.mrb[0].mxu0
    %v534 = vpop.f32.mrb[0].mxu0
    %v535 = vadd.f32 0.0, %v534
    %v536 = vpop.f32.mrb[0].mxu0
    %537 = vmatprep.mubr.bf16.mxu0 0
    %538 = vmatmul.mubr.bf16.gmra.mrb[0].mxu0 %v426
    %v539 = vpop.f32.mrb[0].mxu0
    %v540 = vadd.f32 0.0, %v539
    %v541 = vpop.f32.mrb[0].mxu0
    %v542 = vpop.f32.mrb[0].mxu0
    %v543 = vadd.f32 0.0, %v542
    %v544 = vpop.f32.mrb[0].mxu0
    %545 = vmatprep.mubr.bf16.mxu0 0
    %546 = vmatmul.mubr.bf16.gmra.mrb[0].mxu0 %v427
    %v547 = vpop.f32.mrb[0].mxu0
    %v548 = vadd.f32 0.0, %v547
    %v549 = vpop.f32.mrb[0].mxu0
    %v550 = vpop.f32.mrb[0].mxu0
    %v551 = vadd.f32 0.0, %v550
    %v552 = vpop.f32.mrb[0].mxu0
    %553 = vmatprep.mubr.bf16.mxu0 0
    %554 = vmatmul.mubr.bf16.gmra.mrb[0].mxu0 %v428
    %v555 = vpop.f32.mrb[0].mxu0
    %v556 = vadd.f32 0.0, %v555
    %v557 = vpop.f32.mrb[0].mxu0
    %v558 = vpop.f32.mrb[0].mxu0
    %v559 = vadd.f32 0.0, %v558
    %v560 = vpop.f32.mrb[0].mxu0
    %561 = vmatprep.mubr.bf16.mxu0 0
    %562 = vmatmul.mubr.bf16.gmra.mrb[0].mxu0 %v429
    %v563 = vpop.f32.mrb[0].mxu0
    %v564 = vadd.f32 0.0, %v563
    %v565 = vpop.f32.mrb[0].mxu0
    %v566 = vpop.f32.mrb[0].mxu0
    %v567 = vadd.f32 0.0, %v566
    %v568 = vpop.f32.mrb[0].mxu0
    %569 = vmatprep.mubr.bf16.mxu0 0
    %570 = vmatmul.mubr.bf16.gmra.mrb[0].mxu0 %v430
    %v571 = vpop.f32.mrb[0].mxu0
    %v572 = vadd.f32 0.0, %v571
    %v573 = vpop.f32.mrb[0].mxu0
    %v574 = vpop.f32.mrb[0].mxu0
    %v575 = vadd.f32 0.0, %v574
    %v576 = vpop.f32.mrb[0].mxu0
    %577 = vmatprep.mubr.bf16.mxu0 0
    %578 = vmatmul.mubr.bf16.gmra.mrb[0].mxu0 %v431
    %v579 = vpop.f32.mrb[0].mxu0
    %v580 = vadd.f32 0.0, %v579
    %v581 = vpop.f32.mrb[0].mxu0
    %v582 = vpop.f32.mrb[0].mxu0
    %v583 = vadd.f32 0.0, %v582
    %v584 = vpop.f32.mrb[0].mxu0
    %585 = vmatprep.mubr.bf16.mxu0 0
    %586 = vmatmul.mubr.bf16.gmra.mrb[0].mxu0 %v432
    %v587 = vpop.f32.mrb[0].mxu0
    %v588 = vadd.f32 0.0, %v587
    %v589 = vpop.f32.mrb[0].mxu0
    %v590 = vpop.f32.mrb[0].mxu0
    %v591 = vadd.f32 0.0, %v590
    %v592 = vpop.f32.mrb[0].mxu0
    %593 = vdwg.mxu0
    %v594 = vadd.f32 %v409, %v532
    %v595 = vadd.f32 %v410, %v535
    %v596 = vadd.f32 %v411, %v540
    %v597 = vadd.f32 %v412, %v543
    %v598 = vadd.f32 %v413, %v548
    %v599 = vadd.f32 %v414, %v551
    %v600 = vadd.f32 %v415, %v556
    %v601 = vadd.f32 %v416, %v559
    %v602 = vadd.f32 %v417, %v564
    %v603 = vadd.f32 %v418, %v567
    %v604 = vadd.f32 %v419, %v572
    %v605 = vadd.f32 %v420, %v575
    %v606 = vadd.f32 %v421, %v580
    %v607 = vadd.f32 %v422, %v583
    %v608 = vadd.f32 %v423, %v588
    %v609 = vadd.f32 %v424, %v591
    %v610 = vpack.c.bf16 %v595, %v594
    %v611 = vpack.c.bf16 %v597, %v596
    %v612 = vpack.c.bf16 %v599, %v598
    %v613 = vpack.c.bf16 %v601, %v600
    %v614 = vpack.c.bf16 %v603, %v602
    %v615 = vpack.c.bf16 %v605, %v604
    %v616 = vpack.c.bf16 %v607, %v606
    %v617 = vpack.c.bf16 %v609, %v608
    %v626 = vunpack.c.l.b16 %v610
    %v627 = vunpack.c.h.b16 %v610
    %v628 = vunpack.c.l.b16 %v611
    %v629 = vunpack.c.h.b16 %v611
    %v630 = vunpack.c.l.b16 %v612
    %v631 = vunpack.c.h.b16 %v612
    %v632 = vunpack.c.l.b16 %v613
    %v633 = vunpack.c.h.b16 %v613
    %v634 = vunpack.c.l.b16 %v614
    %v635 = vunpack.c.h.b16 %v614
    %v636 = vunpack.c.l.b16 %v615
    %v637 = vunpack.c.h.b16 %v615
    %v638 = vunpack.c.l.b16 %v616
    %v639 = vunpack.c.h.b16 %v616
    %v640 = vunpack.c.l.b16 %v617
    %v641 = vunpack.c.h.b16 %v617
    %v642 = vpack.c.b16 %v626, %v626
    %v643 = vpack.c.b16 %v627, %v627
    %v644 = vpack.c.b16 %v628, %v628
    %v645 = vpack.c.b16 %v629, %v629
    %v646 = vpack.c.b16 %v630, %v630
    %v647 = vpack.c.b16 %v631, %v631
    %v648 = vpack.c.b16 %v632, %v632
    %v649 = vpack.c.b16 %v633, %v633
    %v650 = vpack.c.b16 %v634, %v634
    %v651 = vpack.c.b16 %v635, %v635
    %v652 = vpack.c.b16 %v636, %v636
    %v653 = vpack.c.b16 %v637, %v637
    %v654 = vpack.c.b16 %v638, %v638
    %v655 = vpack.c.b16 %v639, %v639
    %v656 = vpack.c.b16 %v640, %v640
    %v657 = vpack.c.b16 %v641, %v641
    %674 = vst [vmem:[%s5] sm:$0xf] %v642
    %675 = vst [vmem:[%s5 + $0x4] sm:$0xf] %v643
    %676 = vst [vmem:[%s5 + $0x8] sm:$0xf] %v644
    %677 = vst [vmem:[%s5 + $0xc] sm:$0xf] %v645
    %678 = vst [vmem:[%s5 + $0x10] sm:$0xf] %v646
    %679 = vst [vmem:[%s5 + $0x14] sm:$0xf] %v647
    %680 = vst [vmem:[%s5 + $0x18] sm:$0xf] %v648
    %681 = vst [vmem:[%s5 + $0x1c] sm:$0xf] %v649
    %682 = vst [vmem:[%s5 + $0x20] sm:$0xf] %v650
    %683 = vst [vmem:[%s5 + $0x24] sm:$0xf] %v651
    %684 = vst [vmem:[%s5 + $0x28] sm:$0xf] %v652
    %685 = vst [vmem:[%s5 + $0x2c] sm:$0xf] %v653
    %686 = vst [vmem:[%s5 + $0x30] sm:$0xf] %v654
    %687 = vst [vmem:[%s5 + $0x34] sm:$0xf] %v655
    %688 = vst [vmem:[%s5 + $0x38] sm:$0xf] %v656
    %689 = vst [vmem:[%s5 + $0x3c] sm:$0xf] %v657
  $region29: #{gnn_forward.4} parent=0 // pred_fallthru
    _
  // Predicated region
  $region30: #{gnn_forward.4} parent=0 // pred_check
    _
  $region31: #{gnn_forward.4} parent=0 // pred_check_branch
    %691 = sbr.rel (0) target = $region33
  $region32: #{gnn_forward.4} parent=0 // pred_region
    _
  $region33: #{gnn_forward.4} parent=0 // pred_fallthru
    _
  // Predicated region
  $region34: #{gnn_forward.4} parent=0 // pred_check
    _
  $region35: #{gnn_forward.4} parent=0 // pred_check_branch
    %693 = sbr.rel (0) target = $region37
  $region36: #{gnn_forward.4} parent=0 // pred_region
    _
  $region37: #{gnn_forward.4} parent=0 // pred_fallthru
    _

// kernel: gnn_forward.3
$region0: #{gnn_forward.3}
  #allocation0 [shape = 'u32[]', space=smem, size = 0x4, offset = 0x4, fixed_abs, tag = 'smem constant byte address 0x4 - core index']
  #allocation1 [shape = 'u32[144,128]{1,0:T(1,128)}', space=vmem, size = 0x12000, scoped, tag = 'internal scratch']
  %s0 = inlined_call_operand.vmem [shape: bf16[128,128], index: 0, kind: input, shape index: {}]
  %s1 = inlined_call_operand.vmem [shape: bf16[128,128], index: 1, kind: input, shape index: {}]
  %s2 = inlined_call_operand.vmem [shape: bf16[128,128], index: 2, kind: input, shape index: {}]
  %s3 = inlined_call_operand.vmem [shape: bf16[128,128], index: 3, kind: output, shape index: {0}]
  %s4 = inlined_call_operand.vmem [shape: f32[128,128], index: 4, kind: output, shape index: {1}]
  %5 = xla_tuple %s3, %s4
  %s6 = sld [smem:[#allocation0]]
  $region30: #{gnn_forward.3} parent=0
    _
  %s8 = ssub.s32 1, %s6
  %s9 = scalar_select 0, %s8, %s6
  // Predicated region
  $region2: #{gnn_forward.3} parent=0 // pred_check
    _
  $region3: #{gnn_forward.3} parent=0 // pred_check_branch
    %11 = sbr.rel (0) target = $region5
  $region4: #{gnn_forward.3} parent=0 // pred_region
    _
  $region5: #{gnn_forward.3} parent=0 // pred_fallthru
    _
  // Predicated region
  $region6: #{gnn_forward.3} parent=0 // pred_check
    _
  $region7: #{gnn_forward.3} parent=0 // pred_check_branch
    %13 = sbr.rel (0) target = $region9
  $region8: #{gnn_forward.3} parent=0 // pred_region
    _
  $region9: #{gnn_forward.3} parent=0 // pred_fallthru
    _
  // Predicated region
  $region10: #{gnn_forward.3} parent=0 // pred_check
    _
  $region11: #{gnn_forward.3} parent=0 // pred_check_branch
    %15 = sbr.rel (0) target = $region13
  $region12: #{gnn_forward.3} parent=0 // pred_region
    _
  $region13: #{gnn_forward.3} parent=0 // pred_fallthru
    _
  %v17 = vld [vmem:[%s0] sm:$0xf]
  %v18 = vld [vmem:[%s0 + $0x4] sm:$0xf]
  %v19 = vld [vmem:[%s0 + $0x8] sm:$0xf]
  %v20 = vld [vmem:[%s0 + $0xc] sm:$0xf]
  %v21 = vld [vmem:[%s0 + $0x10] sm:$0xf]
  %v22 = vld [vmem:[%s0 + $0x14] sm:$0xf]
  %v23 = vld [vmem:[%s0 + $0x18] sm:$0xf]
  %v24 = vld [vmem:[%s0 + $0x1c] sm:$0xf]
  %v25 = vld [vmem:[%s0 + $0x20] sm:$0xf]
  %v26 = vld [vmem:[%s0 + $0x24] sm:$0xf]
  %v27 = vld [vmem:[%s0 + $0x28] sm:$0xf]
  %v28 = vld [vmem:[%s0 + $0x2c] sm:$0xf]
  %v29 = vld [vmem:[%s0 + $0x30] sm:$0xf]
  %v30 = vld [vmem:[%s0 + $0x34] sm:$0xf]
  %v31 = vld [vmem:[%s0 + $0x38] sm:$0xf]
  %v32 = vld [vmem:[%s0 + $0x3c] sm:$0xf]
  %v33 = vld [vmem:[%s1] sm:$0xf]
  %v34 = vld [vmem:[%s1 + $0x4] sm:$0xf]
  %v35 = vld [vmem:[%s1 + $0x8] sm:$0xf]
  %v36 = vld [vmem:[%s1 + $0xc] sm:$0xf]
  %v37 = vld [vmem:[%s1 + $0x10] sm:$0xf]
  %v38 = vld [vmem:[%s1 + $0x14] sm:$0xf]
  %v39 = vld [vmem:[%s1 + $0x18] sm:$0xf]
  %v40 = vld [vmem:[%s1 + $0x1c] sm:$0xf]
  %v41 = vld [vmem:[%s1 + $0x20] sm:$0xf]
  %v42 = vld [vmem:[%s1 + $0x24] sm:$0xf]
  %v43 = vld [vmem:[%s1 + $0x28] sm:$0xf]
  %v44 = vld [vmem:[%s1 + $0x2c] sm:$0xf]
  %v45 = vld [vmem:[%s1 + $0x30] sm:$0xf]
  %v46 = vld [vmem:[%s1 + $0x34] sm:$0xf]
  %v47 = vld [vmem:[%s1 + $0x38] sm:$0xf]
  %v48 = vld [vmem:[%s1 + $0x3c] sm:$0xf]
  %v65 = vunpack.c.l.b16 %v17
  %v66 = vunpack.c.l.b16 %v18
  %v67 = vunpack.c.l.b16 %v19
  %v68 = vunpack.c.l.b16 %v20
  %v69 = vunpack.c.l.b16 %v21
  %v70 = vunpack.c.l.b16 %v22
  %v71 = vunpack.c.l.b16 %v23
  %v72 = vunpack.c.l.b16 %v24
  %v73 = vunpack.c.l.b16 %v25
  %v74 = vunpack.c.l.b16 %v26
  %v75 = vunpack.c.l.b16 %v27
  %v76 = vunpack.c.l.b16 %v28
  %v77 = vunpack.c.l.b16 %v29
  %v78 = vunpack.c.l.b16 %v30
  %v79 = vunpack.c.l.b16 %v31
  %v80 = vunpack.c.l.b16 %v32
  %v81 = vpack.c.b16 %v66, %v65
  %v82 = vpack.c.b16 %v68, %v67
  %v83 = vpack.c.b16 %v70, %v69
  %v84 = vpack.c.b16 %v72, %v71
  %v85 = vpack.c.b16 %v74, %v73
  %v86 = vpack.c.b16 %v76, %v75
  %v87 = vpack.c.b16 %v78, %v77
  %v88 = vpack.c.b16 %v80, %v79
  %v113 = vunpack.c.l.b16 %v33
  %v114 = vunpack.c.l.b16 %v34
  %v115 = vunpack.c.l.b16 %v35
  %v116 = vunpack.c.l.b16 %v36
  %v117 = vunpack.c.l.b16 %v37
  %v118 = vunpack.c.l.b16 %v38
  %v119 = vunpack.c.l.b16 %v39
  %v120 = vunpack.c.l.b16 %v40
  %v121 = vunpack.c.l.b16 %v41
  %v122 = vunpack.c.l.b16 %v42
  %v123 = vunpack.c.l.b16 %v43
  %v124 = vunpack.c.l.b16 %v44
  %v125 = vunpack.c.l.b16 %v45
  %v126 = vunpack.c.l.b16 %v46
  %v127 = vunpack.c.l.b16 %v47
  %v128 = vunpack.c.l.b16 %v48
  %v129 = vpack.c.b16 %v114, %v113
  %v130 = vpack.c.b16 %v116, %v115
  %v131 = vpack.c.b16 %v118, %v117
  %v132 = vpack.c.b16 %v120, %v119
  %v133 = vpack.c.b16 %v122, %v121
  %v134 = vpack.c.b16 %v124, %v123
  %v135 = vpack.c.b16 %v126, %v125
  %v136 = vpack.c.b16 %v128, %v127
  %145 = vmatprep.subr.bf16.mxu0 0
  %146 = vmatpush1.bf16.msra.mxu0 %v129
  %147 = vmatprep.subr.bf16.mxu0 0
  %148 = vmatpush1.bf16.msra.mxu0 %v130
  %149 = vmatprep.subr.bf16.mxu0 0
  %150 = vmatpush1.bf16.msra.mxu0 %v131
  %151 = vmatprep.subr.bf16.mxu0 0
  %152 = vmatpush1.bf16.msra.mxu0 %v132
  %153 = vmatprep.subr.bf16.mxu0 0
  %154 = vmatpush1.bf16.msra.mxu0 %v133
  %155 = vmatprep.subr.bf16.mxu0 0
  %156 = vmatpush1.bf16.msra.mxu0 %v134
  %157 = vmatprep.subr.bf16.mxu0 0
  %158 = vmatpush1.bf16.msra.mxu0 %v135
  %159 = vmatprep.subr.bf16.mxu0 0
  %160 = vmatpush1.bf16.msra.mxu0 %v136
  %161 = vmatprep.subr.bf16.mxu0 0
  %162 = vmatpush1.bf16.msra.mxu0 0
  %163 = vmatprep.subr.bf16.mxu0 0
  %164 = vmatpush1.bf16.msra.mxu0 0
  %165 = vmatprep.subr.bf16.mxu0 0
  %166 = vmatpush1.bf16.msra.mxu0 0
  %167 = vmatprep.subr.bf16.mxu0 0
  %168 = vmatpush1.bf16.msra.mxu0 0
  %169 = vmatprep.subr.bf16.mxu0 0
  %170 = vmatpush1.bf16.msra.mxu0 0
  %171 = vmatprep.subr.bf16.mxu0 0
  %172 = vmatpush1.bf16.msra.mxu0 0
  %173 = vmatprep.subr.bf16.mxu0 0
  %174 = vmatpush1.bf16.msra.mxu0 0
  %175 = vmatprep.subr.bf16.mxu0 0
  %176 = vmatpush1.bf16.msra.mxu0 0
  %177 = vmatprep.mubr.bf16.mxu0 0
  %178 = vmatmul.mubr.bf16.gmra.mrb[0].mxu0 %v81
  %v179 = vpop.f32.mrb[0].mxu0
  %v180 = vadd.f32 0.0, %v179
  %v181 = vpop.f32.mrb[0].mxu0
  %v182 = vpop.f32.mrb[0].mxu0
  %v183 = vadd.f32 0.0, %v182
  %v184 = vpop.f32.mrb[0].mxu0
  %185 = vmatprep.mubr.bf16.mxu0 0
  %186 = vmatmul.mubr.bf16.gmra.mrb[0].mxu0 %v82
  %v187 = vpop.f32.mrb[0].mxu0
  %v188 = vadd.f32 0.0, %v187
  %v189 = vpop.f32.mrb[0].mxu0
  %v190 = vpop.f32.mrb[0].mxu0
  %v191 = vadd.f32 0.0, %v190
  %v192 = vpop.f32.mrb[0].mxu0
  %193 = vmatprep.mubr.bf16.mxu0 0
  %194 = vmatmul.mubr.bf16.gmra.mrb[0].mxu0 %v83
  %v195 = vpop.f32.mrb[0].mxu0
  %v196 = vadd.f32 0.0, %v195
  %v197 = vpop.f32.mrb[0].mxu0
  %v198 = vpop.f32.mrb[0].mxu0
  %v199 = vadd.f32 0.0, %v198
  %v200 = vpop.f32.mrb[0].mxu0
  %201 = vmatprep.mubr.bf16.mxu0 0
  %202 = vmatmul.mubr.bf16.gmra.mrb[0].mxu0 %v84
  %v203 = vpop.f32.mrb[0].mxu0
  %v204 = vadd.f32 0.0, %v203
  %v205 = vpop.f32.mrb[0].mxu0
  %v206 = vpop.f32.mrb[0].mxu0
  %v207 = vadd.f32 0.0, %v206
  %v208 = vpop.f32.mrb[0].mxu0
  %209 = vmatprep.mubr.bf16.mxu0 0
  %210 = vmatmul.mubr.bf16.gmra.mrb[0].mxu0 %v85
  %v211 = vpop.f32.mrb[0].mxu0
  %v212 = vadd.f32 0.0, %v211
  %v213 = vpop.f32.mrb[0].mxu0
  %v214 = vpop.f32.mrb[0].mxu0
  %v215 = vadd.f32 0.0, %v214
  %v216 = vpop.f32.mrb[0].mxu0
  %217 = vmatprep.mubr.bf16.mxu0 0
  %218 = vmatmul.mubr.bf16.gmra.mrb[0].mxu0 %v86
  %v219 = vpop.f32.mrb[0].mxu0
  %v220 = vadd.f32 0.0, %v219
  %v221 = vpop.f32.mrb[0].mxu0
  %v222 = vpop.f32.mrb[0].mxu0
  %v223 = vadd.f32 0.0, %v222
  %v224 = vpop.f32.mrb[0].mxu0
  %225 = vmatprep.mubr.bf16.mxu0 0
  %226 = vmatmul.mubr.bf16.gmra.mrb[0].mxu0 %v87
  %v227 = vpop.f32.mrb[0].mxu0
  %v228 = vadd.f32 0.0, %v227
  %v229 = vpop.f32.mrb[0].mxu0
  %v230 = vpop.f32.mrb[0].mxu0
  %v231 = vadd.f32 0.0, %v230
  %v232 = vpop.f32.mrb[0].mxu0
  %233 = vmatprep.mubr.bf16.mxu0 0
  %234 = vmatmul.mubr.bf16.gmra.mrb[0].mxu0 %v88
  %v235 = vpop.f32.mrb[0].mxu0
  %v236 = vadd.f32 0.0, %v235
  %v237 = vpop.f32.mrb[0].mxu0
  %v238 = vpop.f32.mrb[0].mxu0
  %v239 = vadd.f32 0.0, %v238
  %v240 = vpop.f32.mrb[0].mxu0
  %241 = vdwg.mxu0
  %v242 = vpack.c.bf16 %v183, %v180
  %v243 = vpack.c.bf16 %v191, %v188
  %v244 = vpack.c.bf16 %v199, %v196
  %v245 = vpack.c.bf16 %v207, %v204
  %v246 = vpack.c.bf16 %v215, %v212
  %v247 = vpack.c.bf16 %v223, %v220
  %v248 = vpack.c.bf16 %v231, %v228
  %v249 = vpack.c.bf16 %v239, %v236
  %v258 = vunpack.c.l.b16 %v242
  %v259 = vunpack.c.h.b16 %v242
  %v260 = vunpack.c.l.b16 %v243
  %v261 = vunpack.c.h.b16 %v243
  %v262 = vunpack.c.l.b16 %v244
  %v263 = vunpack.c.h.b16 %v244
  %v264 = vunpack.c.l.b16 %v245
  %v265 = vunpack.c.h.b16 %v245
  %v266 = vunpack.c.l.b16 %v246
  %v267 = vunpack.c.h.b16 %v246
  %v268 = vunpack.c.l.b16 %v247
  %v269 = vunpack.c.h.b16 %v247
  %v270 = vunpack.c.l.b16 %v248
  %v271 = vunpack.c.h.b16 %v248
  %v272 = vunpack.c.l.b16 %v249
  %v273 = vunpack.c.h.b16 %v249
  %v274 = vpack.c.b16 %v258, %v258
  %v275 = vpack.c.b16 %v259, %v259
  %v276 = vpack.c.b16 %v260, %v260
  %v277 = vpack.c.b16 %v261, %v261
  %v278 = vpack.c.b16 %v262, %v262
  %v279 = vpack.c.b16 %v263, %v263
  %v280 = vpack.c.b16 %v264, %v264
  %v281 = vpack.c.b16 %v265, %v265
  %v282 = vpack.c.b16 %v266, %v266
  %v283 = vpack.c.b16 %v267, %v267
  %v284 = vpack.c.b16 %v268, %v268
  %v285 = vpack.c.b16 %v269, %v269
  %v286 = vpack.c.b16 %v270, %v270
  %v287 = vpack.c.b16 %v271, %v271
  %v288 = vpack.c.b16 %v272, %v272
  %v289 = vpack.c.b16 %v273, %v273
  %306 = vst [vmem:[%s3] sm:$0xf] %v274
  %307 = vst [vmem:[%s3 + $0x4] sm:$0xf] %v275
  %308 = vst [vmem:[%s3 + $0x8] sm:$0xf] %v276
  %309 = vst [vmem:[%s3 + $0xc] sm:$0xf] %v277
  %310 = vst [vmem:[%s3 + $0x10] sm:$0xf] %v278
  %311 = vst [vmem:[%s3 + $0x14] sm:$0xf] %v279
  %312 = vst [vmem:[%s3 + $0x18] sm:$0xf] %v280
  %313 = vst [vmem:[%s3 + $0x1c] sm:$0xf] %v281
  %314 = vst [vmem:[%s3 + $0x20] sm:$0xf] %v282
  %315 = vst [vmem:[%s3 + $0x24] sm:$0xf] %v283
  %316 = vst [vmem:[%s3 + $0x28] sm:$0xf] %v284
  %317 = vst [vmem:[%s3 + $0x2c] sm:$0xf] %v285
  %318 = vst [vmem:[%s3 + $0x30] sm:$0xf] %v286
  %319 = vst [vmem:[%s3 + $0x34] sm:$0xf] %v287
  %320 = vst [vmem:[%s3 + $0x38] sm:$0xf] %v288
  %321 = vst [vmem:[%s3 + $0x3c] sm:$0xf] %v289
  %v322 = vunpack.c.l.bf16 %v17
  %v323 = vunpack.c.l.bf16 %v18
  %v324 = vunpack.c.l.bf16 %v19
  %v325 = vunpack.c.l.bf16 %v20
  %v326 = vunpack.c.l.bf16 %v21
  %v327 = vunpack.c.l.bf16 %v22
  %v328 = vunpack.c.l.bf16 %v23
  %v329 = vunpack.c.l.bf16 %v24
  %v330 = vunpack.c.l.bf16 %v25
  %v331 = vunpack.c.l.bf16 %v26
  %v332 = vunpack.c.l.bf16 %v27
  %v333 = vunpack.c.l.bf16 %v28
  %v334 = vunpack.c.l.bf16 %v29
  %v335 = vunpack.c.l.bf16 %v30
  %v336 = vunpack.c.l.bf16 %v31
  %v337 = vunpack.c.l.bf16 %v32
  %vm338 = vcmp.ge.f32.partialorder %v322, 0.0
  %vm339 = vcmp.ge.f32.partialorder %v323, 0.0
  %vm340 = vcmp.ge.f32.partialorder %v324, 0.0
  %vm341 = vcmp.ge.f32.partialorder %v325, 0.0
  %vm342 = vcmp.ge.f32.partialorder %v326, 0.0
  %vm343 = vcmp.ge.f32.partialorder %v327, 0.0
  %vm344 = vcmp.ge.f32.partialorder %v328, 0.0
  %vm345 = vcmp.ge.f32.partialorder %v329, 0.0
  %vm346 = vcmp.ge.f32.partialorder %v330, 0.0
  %vm347 = vcmp.ge.f32.partialorder %v331, 0.0
  %vm348 = vcmp.ge.f32.partialorder %v332, 0.0
  %vm349 = vcmp.ge.f32.partialorder %v333, 0.0
  %vm350 = vcmp.ge.f32.partialorder %v334, 0.0
  %vm351 = vcmp.ge.f32.partialorder %v335, 0.0
  %vm352 = vcmp.ge.f32.partialorder %v336, 0.0
  %vm353 = vcmp.ge.f32.partialorder %v337, 0.0
  %v354 = vmul.f32 %v322, 0.01
  %v355 = vmul.f32 %v323, 0.01
  %v356 = vmul.f32 %v324, 0.01
  %v357 = vmul.f32 %v325, 0.01
  %v358 = vmul.f32 %v326, 0.01
  %v359 = vmul.f32 %v327, 0.01
  %v360 = vmul.f32 %v328, 0.01
  %v361 = vmul.f32 %v329, 0.01
  %v362 = vmul.f32 %v330, 0.01
  %v363 = vmul.f32 %v331, 0.01
  %v364 = vmul.f32 %v332, 0.01
  %v365 = vmul.f32 %v333, 0.01
  %v366 = vmul.f32 %v334, 0.01
  %v367 = vmul.f32 %v335, 0.01
  %v368 = vmul.f32 %v336, 0.01
  %v369 = vmul.f32 %v337, 0.01
  %v370 = vsel %vm338, %v322, %v354
  %v371 = vsel %vm339, %v323, %v355
  %v372 = vsel %vm340, %v324, %v356
  %v373 = vsel %vm341, %v325, %v357
  %v374 = vsel %vm342, %v326, %v358
  %v375 = vsel %vm343, %v327, %v359
  %v376 = vsel %vm344, %v328, %v360
  %v377 = vsel %vm345, %v329, %v361
  %v378 = vsel %vm346, %v330, %v362
  %v379 = vsel %vm347, %v331, %v363
  %v380 = vsel %vm348, %v332, %v364
  %v381 = vsel %vm349, %v333, %v365
  %v382 = vsel %vm350, %v334, %v366
  %v383 = vsel %vm351, %v335, %v367
  %v384 = vsel %vm352, %v336, %v368
  %v385 = vsel %vm353, %v337, %v369
  %v386 = vpack.c.bf16 %v371, %v370
  %v387 = vpack.c.bf16 %v373, %v372
  %v388 = vpack.c.bf16 %v375, %v374
  %v389 = vpack.c.bf16 %v377, %v376
  %v390 = vpack.c.bf16 %v379, %v378
  %v391 = vpack.c.bf16 %v381, %v380
  %v392 = vpack.c.bf16 %v383, %v382
  %v393 = vpack.c.bf16 %v385, %v384
  %v394 = vld [vmem:[%s2] sm:$0xf]
  %v395 = vld [vmem:[%s2 + $0x4] sm:$0xf]
  %v396 = vld [vmem:[%s2 + $0x8] sm:$0xf]
  %v397 = vld [vmem:[%s2 + $0xc] sm:$0xf]
  %v398 = vld [vmem:[%s2 + $0x10] sm:$0xf]
  %v399 = vld [vmem:[%s2 + $0x14] sm:$0xf]
  %v400 = vld [vmem:[%s2 + $0x18] sm:$0xf]
  %v401 = vld [vmem:[%s2 + $0x1c] sm:$0xf]
  %v402 = vld [vmem:[%s2 + $0x20] sm:$0xf]
  %v403 = vld [vmem:[%s2 + $0x24] sm:$0xf]
  %v404 = vld [vmem:[%s2 + $0x28] sm:$0xf]
  %v405 = vld [vmem:[%s2 + $0x2c] sm:$0xf]
  %v406 = vld [vmem:[%s2 + $0x30] sm:$0xf]
  %v407 = vld [vmem:[%s2 + $0x34] sm:$0xf]
  %v408 = vld [vmem:[%s2 + $0x38] sm:$0xf]
  %v409 = vld [vmem:[%s2 + $0x3c] sm:$0xf]
  %v426 = vunpack.c.l.b16 %v394
  %v427 = vunpack.c.l.b16 %v395
  %v428 = vunpack.c.l.b16 %v396
  %v429 = vunpack.c.l.b16 %v397
  %v430 = vunpack.c.l.b16 %v398
  %v431 = vunpack.c.l.b16 %v399
  %v432 = vunpack.c.l.b16 %v400
  %v433 = vunpack.c.l.b16 %v401
  %v434 = vunpack.c.l.b16 %v402
  %v435 = vunpack.c.l.b16 %v403
  %v436 = vunpack.c.l.b16 %v404
  %v437 = vunpack.c.l.b16 %v405
  %v438 = vunpack.c.l.b16 %v406
  %v439 = vunpack.c.l.b16 %v407
  %v440 = vunpack.c.l.b16 %v408
  %v441 = vunpack.c.l.b16 %v409
  %v442 = vpack.c.b16 %v427, %v426
  %v443 = vpack.c.b16 %v429, %v428
  %v444 = vpack.c.b16 %v431, %v430
  %v445 = vpack.c.b16 %v433, %v432
  %v446 = vpack.c.b16 %v435, %v434
  %v447 = vpack.c.b16 %v437, %v436
  %v448 = vpack.c.b16 %v439, %v438
  %v449 = vpack.c.b16 %v441, %v440
  %458 = vmatprep.subr.bf16.mxu0 0
  %459 = vmatpush1.bf16.msra.mxu0 %v442
  %460 = vmatprep.subr.bf16.mxu0 0
  %461 = vmatpush1.bf16.msra.mxu0 %v443
  %462 = vmatprep.subr.bf16.mxu0 0
  %463 = vmatpush1.bf16.msra.mxu0 %v444
  %464 = vmatprep.subr.bf16.mxu0 0
  %465 = vmatpush1.bf16.msra.mxu0 %v445
  %466 = vmatprep.subr.bf16.mxu0 0
  %467 = vmatpush1.bf16.msra.mxu0 %v446
  %468 = vmatprep.subr.bf16.mxu0 0
  %469 = vmatpush1.bf16.msra.mxu0 %v447
  %470 = vmatprep.subr.bf16.mxu0 0
  %471 = vmatpush1.bf16.msra.mxu0 %v448
  %472 = vmatprep.subr.bf16.mxu0 0
  %473 = vmatpush1.bf16.msra.mxu0 %v449
  %474 = vmatprep.subr.bf16.mxu0 0
  %475 = vmatpush1.bf16.msra.mxu0 0
  %476 = vmatprep.subr.bf16.mxu0 0
  %477 = vmatpush1.bf16.msra.mxu0 0
  %478 = vmatprep.subr.bf16.mxu0 0
  %479 = vmatpush1.bf16.msra.mxu0 0
  %480 = vmatprep.subr.bf16.mxu0 0
  %481 = vmatpush1.bf16.msra.mxu0 0
  %482 = vmatprep.subr.bf16.mxu0 0
  %483 = vmatpush1.bf16.msra.mxu0 0
  %484 = vmatprep.subr.bf16.mxu0 0
  %485 = vmatpush1.bf16.msra.mxu0 0
  %486 = vmatprep.subr.bf16.mxu0 0
  %487 = vmatpush1.bf16.msra.mxu0 0
  %488 = vmatprep.subr.bf16.mxu0 0
  %489 = vmatpush1.bf16.msra.mxu0 0
  %490 = vmatprep.mubr.bf16.mxu0 0
  %491 = vmatmul.mubr.bf16.gmra.mrb[0].mxu0 %v386
  %v492 = vpop.f32.mrb[0].mxu0
  %v493 = vadd.f32 0.0, %v492
  %v494 = vpop.f32.mrb[0].mxu0
  %v495 = vpop.f32.mrb[0].mxu0
  %v496 = vadd.f32 0.0, %v495
  %v497 = vpop.f32.mrb[0].mxu0
  %498 = vmatprep.mubr.bf16.mxu0 0
  %499 = vmatmul.mubr.bf16.gmra.mrb[0].mxu0 %v387
  %v500 = vpop.f32.mrb[0].mxu0
  %v501 = vadd.f32 0.0, %v500
  %v502 = vpop.f32.mrb[0].mxu0
  %v503 = vpop.f32.mrb[0].mxu0
  %v504 = vadd.f32 0.0, %v503
  %v505 = vpop.f32.mrb[0].mxu0
  %506 = vmatprep.mubr.bf16.mxu0 0
  %507 = vmatmul.mubr.bf16.gmra.mrb[0].mxu0 %v388
  %v508 = vpop.f32.mrb[0].mxu0
  %v509 = vadd.f32 0.0, %v508
  %v510 = vpop.f32.mrb[0].mxu0
  %v511 = vpop.f32.mrb[0].mxu0
  %v512 = vadd.f32 0.0, %v511
  %v513 = vpop.f32.mrb[0].mxu0
  %514 = vmatprep.mubr.bf16.mxu0 0
  %515 = vmatmul.mubr.bf16.gmra.mrb[0].mxu0 %v389
  %v516 = vpop.f32.mrb[0].mxu0
  %v517 = vadd.f32 0.0, %v516
  %v518 = vpop.f32.mrb[0].mxu0
  %v519 = vpop.f32.mrb[0].mxu0
  %v520 = vadd.f32 0.0, %v519
  %v521 = vpop.f32.mrb[0].mxu0
  %522 = vmatprep.mubr.bf16.mxu0 0
  %523 = vmatmul.mubr.bf16.gmra.mrb[0].mxu0 %v390
  %v524 = vpop.f32.mrb[0].mxu0
  %v525 = vadd.f32 0.0, %v524
  %v526 = vpop.f32.mrb[0].mxu0
  %v527 = vpop.f32.mrb[0].mxu0
  %v528 = vadd.f32 0.0, %v527
  %v529 = vpop.f32.mrb[0].mxu0
  %530 = vmatprep.mubr.bf16.mxu0 0
  %531 = vmatmul.mubr.bf16.gmra.mrb[0].mxu0 %v391
  %v532 = vpop.f32.mrb[0].mxu0
  %v533 = vadd.f32 0.0, %v532
  %v534 = vpop.f32.mrb[0].mxu0
  %v535 = vpop.f32.mrb[0].mxu0
  %v536 = vadd.f32 0.0, %v535
  %v537 = vpop.f32.mrb[0].mxu0
  %538 = vmatprep.mubr.bf16.mxu0 0
  %539 = vmatmul.mubr.bf16.gmra.mrb[0].mxu0 %v392
  %v540 = vpop.f32.mrb[0].mxu0
  %v541 = vadd.f32 0.0, %v540
  %v542 = vpop.f32.mrb[0].mxu0
  %v543 = vpop.f32.mrb[0].mxu0
  %v544 = vadd.f32 0.0, %v543
  %v545 = vpop.f32.mrb[0].mxu0
  %546 = vmatprep.mubr.bf16.mxu0 0
  %547 = vmatmul.mubr.bf16.gmra.mrb[0].mxu0 %v393
  %v548 = vpop.f32.mrb[0].mxu0
  %v549 = vadd.f32 0.0, %v548
  %v550 = vpop.f32.mrb[0].mxu0
  %v551 = vpop.f32.mrb[0].mxu0
  %v552 = vadd.f32 0.0, %v551
  %v553 = vpop.f32.mrb[0].mxu0
  %554 = vdwg.mxu0
  %555 = vst [vmem:[%s4] sm:$0xff] %v493
  %556 = vst [vmem:[%s4 + $0x8] sm:$0xff] %v496
  %557 = vst [vmem:[%s4 + $0x10] sm:$0xff] %v501
  %558 = vst [vmem:[%s4 + $0x18] sm:$0xff] %v504
  %559 = vst [vmem:[%s4 + $0x20] sm:$0xff] %v509
  %560 = vst [vmem:[%s4 + $0x28] sm:$0xff] %v512
  %561 = vst [vmem:[%s4 + $0x30] sm:$0xff] %v517
  %562 = vst [vmem:[%s4 + $0x38] sm:$0xff] %v520
  %563 = vst [vmem:[%s4 + $0x40] sm:$0xff] %v525
  %564 = vst [vmem:[%s4 + $0x48] sm:$0xff] %v528
  %565 = vst [vmem:[%s4 + $0x50] sm:$0xff] %v533
  %566 = vst [vmem:[%s4 + $0x58] sm:$0xff] %v536
  %567 = vst [vmem:[%s4 + $0x60] sm:$0xff] %v541
  %568 = vst [vmem:[%s4 + $0x68] sm:$0xff] %v544
  %569 = vst [vmem:[%s4 + $0x70] sm:$0xff] %v549
  %570 = vst [vmem:[%s4 + $0x78] sm:$0xff] %v552
  // Predicated region
  $region14: #{gnn_forward.3} parent=0 // pred_check
    _
  $region15: #{gnn_forward.3} parent=0 // pred_check_branch
    %572 = sbr.rel (0) target = $region17
  $region16: #{gnn_forward.3} parent=0 // pred_region
    _
  $region17: #{gnn_forward.3} parent=0 // pred_fallthru
    _
  // Predicated region
  $region18: #{gnn_forward.3} parent=0 // pred_check
    _
  $region19: #{gnn_forward.3} parent=0 // pred_check_branch
    %574 = sbr.rel (0) target = $region21
  $region20: #{gnn_forward.3} parent=0 // pred_region
    _
  $region21: #{gnn_forward.3} parent=0 // pred_fallthru
    _
  // Predicated region
  $region22: #{gnn_forward.3} parent=0 // pred_check
    _
  $region23: #{gnn_forward.3} parent=0 // pred_check_branch
    %576 = sbr.rel (0) target = $region25
  $region24: #{gnn_forward.3} parent=0 // pred_region
    _
  $region25: #{gnn_forward.3} parent=0 // pred_fallthru
    _
  // Predicated region
  $region26: #{gnn_forward.3} parent=0 // pred_check
    _
  $region27: #{gnn_forward.3} parent=0 // pred_check_branch
    %578 = sbr.rel (0) target = $region29
  $region28: #{gnn_forward.3} parent=0 // pred_region
    _
  $region29: #{gnn_forward.3} parent=0 // pred_fallthru
    _

// kernel: gnn_forward.5
$region0: #{gnn_forward.5}
  #allocation0 [shape = 'u32[]', space=smem, size = 0x4, offset = 0x4, fixed_abs, tag = 'smem constant byte address 0x4 - core index']
  #allocation1 [shape = 'u32[144,128]{1,0:T(1,128)}', space=vmem, size = 0x12000, scoped, tag = 'internal scratch']
  #allocation2 [shape = 'f32[128,128]{1,0:T(8,128)}', space=vmem, size = 0x10000, scoped, tag = 'scratch operand']
  %s0 = inlined_call_operand.vmem [shape: bf16[128,128], index: 0, kind: input, shape index: {}]
  %s1 = inlined_call_operand.vmem [shape: bf16[128,128], index: 1, kind: input, shape index: {}]
  %s2 = inlined_call_operand.vmem [shape: f32[1,128], index: 2, kind: input, shape index: {}]
  %s3 = inlined_call_operand.vmem [shape: bf16[128,128], index: 3, kind: input, shape index: {}]
  %s4 = inlined_call_operand.vmem [shape: f32[1,128], index: 4, kind: input, shape index: {}]
  %s5 = inlined_call_operand.vmem [shape: bf16[128,128], index: 5, kind: output, shape index: {0}]
  %s6 = inlined_call_operand.vmem [shape: f32[128,128], index: 6, kind: output, shape index: {1}]
  %7 = xla_tuple %s5, %s6
  %s8 = sld [smem:[#allocation0]]
  $region46: #{gnn_forward.5} parent=0
    _
  %s10 = ssub.s32 1, %s8
  %s11 = scalar_select 0, %s10, %s8
  // Predicated region
  $region2: #{gnn_forward.5} parent=0 // pred_check
    _
  $region3: #{gnn_forward.5} parent=0 // pred_check_branch
    %13 = sbr.rel (0) target = $region5
  $region4: #{gnn_forward.5} parent=0 // pred_region
    _
  $region5: #{gnn_forward.5} parent=0 // pred_fallthru
    _
  // Predicated region
  $region6: #{gnn_forward.5} parent=0 // pred_check
    _
  $region7: #{gnn_forward.5} parent=0 // pred_check_branch
    %15 = sbr.rel (0) target = $region9
  $region8: #{gnn_forward.5} parent=0 // pred_region
    _
  $region9: #{gnn_forward.5} parent=0 // pred_fallthru
    _
  // Predicated region
  $region10: #{gnn_forward.5} parent=0 // pred_check
    _
  $region11: #{gnn_forward.5} parent=0 // pred_check_branch
    %17 = sbr.rel (0) target = $region13
  $region12: #{gnn_forward.5} parent=0 // pred_region
    _
  $region13: #{gnn_forward.5} parent=0 // pred_fallthru
    _
  // Predicated region
  $region14: #{gnn_forward.5} parent=0 // pred_check
    _
  $region15: #{gnn_forward.5} parent=0 // pred_check_branch
    %19 = sbr.rel (0) target = $region17
  $region16: #{gnn_forward.5} parent=0 // pred_region
    _
  $region17: #{gnn_forward.5} parent=0 // pred_fallthru
    _
  // Predicated region
  $region18: #{gnn_forward.5} parent=0 // pred_check
    _
  $region19: #{gnn_forward.5} parent=0 // pred_check_branch
    %21 = sbr.rel (0) target = $region21
  $region20: #{gnn_forward.5} parent=0 // pred_region
    _
  $region21: #{gnn_forward.5} parent=0 // pred_fallthru
    _
  %p23 = scmp.eq.s32.totalorder 0, 0
  // Predicated region
  $region22: #{gnn_forward.5} parent=0 // pred_check
    %p24 = pneg %p23
  $region23: #{gnn_forward.5} parent=0 // pred_check_branch
    %26 = sbr.rel (%p24) target = $region25
  $region24: #{gnn_forward.5} parent=0 // pred_region
    %27 = vst [vmem:[#allocation2] sm:$0xff] 0.0
    %28 = vst [vmem:[#allocation2 + $0x8] sm:$0xff] 0.0
    %29 = vst [vmem:[#allocation2 + $0x10] sm:$0xff] 0.0
    %30 = vst [vmem:[#allocation2 + $0x18] sm:$0xff] 0.0
    %31 = vst [vmem:[#allocation2 + $0x20] sm:$0xff] 0.0
    %32 = vst [vmem:[#allocation2 + $0x28] sm:$0xff] 0.0
    %33 = vst [vmem:[#allocation2 + $0x30] sm:$0xff] 0.0
    %34 = vst [vmem:[#allocation2 + $0x38] sm:$0xff] 0.0
    %35 = vst [vmem:[#allocation2 + $0x40] sm:$0xff] 0.0
    %36 = vst [vmem:[#allocation2 + $0x48] sm:$0xff] 0.0
    %37 = vst [vmem:[#allocation2 + $0x50] sm:$0xff] 0.0
    %38 = vst [vmem:[#allocation2 + $0x58] sm:$0xff] 0.0
    %39 = vst [vmem:[#allocation2 + $0x60] sm:$0xff] 0.0
    %40 = vst [vmem:[#allocation2 + $0x68] sm:$0xff] 0.0
    %41 = vst [vmem:[#allocation2 + $0x70] sm:$0xff] 0.0
    %42 = vst [vmem:[#allocation2 + $0x78] sm:$0xff] 0.0
  $region25: #{gnn_forward.5} parent=0 // pred_fallthru
    _
  %s43 = smul.u32 0, 128
  %s44 = sshra.s32 %s43, 3
  %s45 = sand.u32 %s43, 7
  %s46 = smul.addr %s44, 4
  %s47 = scalar_lea.vmem %s1, %s46
  %v48 = vld [vmem:[%s47] sm:$0xf]
  %v49 = vld [vmem:[%s47 + $0x4] sm:$0xf]
  %v50 = vld [vmem:[%s47 + $0x8] sm:$0xf]
  %v51 = vld [vmem:[%s47 + $0xc] sm:$0xf]
  %v52 = vld [vmem:[%s47 + $0x10] sm:$0xf]
  %v53 = vld [vmem:[%s47 + $0x14] sm:$0xf]
  %v54 = vld [vmem:[%s47 + $0x18] sm:$0xf]
  %v55 = vld [vmem:[%s47 + $0x1c] sm:$0xf]
  %v56 = vld [vmem:[%s47 + $0x20] sm:$0xf]
  %v57 = vld [vmem:[%s47 + $0x24] sm:$0xf]
  %v58 = vld [vmem:[%s47 + $0x28] sm:$0xf]
  %v59 = vld [vmem:[%s47 + $0x2c] sm:$0xf]
  %v60 = vld [vmem:[%s47 + $0x30] sm:$0xf]
  %v61 = vld [vmem:[%s47 + $0x34] sm:$0xf]
  %v62 = vld [vmem:[%s47 + $0x38] sm:$0xf]
  %v63 = vld [vmem:[%s47 + $0x3c] sm:$0xf]
  %v64 = vld [vmem:[#allocation2] sm:$0xff]
  %v65 = vld [vmem:[#allocation2 + $0x8] sm:$0xff]
  %v66 = vld [vmem:[#allocation2 + $0x10] sm:$0xff]
  %v67 = vld [vmem:[#allocation2 + $0x18] sm:$0xff]
  %v68 = vld [vmem:[#allocation2 + $0x20] sm:$0xff]
  %v69 = vld [vmem:[#allocation2 + $0x28] sm:$0xff]
  %v70 = vld [vmem:[#allocation2 + $0x30] sm:$0xff]
  %v71 = vld [vmem:[#allocation2 + $0x38] sm:$0xff]
  %v72 = vld [vmem:[#allocation2 + $0x40] sm:$0xff]
  %v73 = vld [vmem:[#allocation2 + $0x48] sm:$0xff]
  %v74 = vld [vmem:[#allocation2 + $0x50] sm:$0xff]
  %v75 = vld [vmem:[#allocation2 + $0x58] sm:$0xff]
  %v76 = vld [vmem:[#allocation2 + $0x60] sm:$0xff]
  %v77 = vld [vmem:[#allocation2 + $0x68] sm:$0xff]
  %v78 = vld [vmem:[#allocation2 + $0x70] sm:$0xff]
  %v79 = vld [vmem:[#allocation2 + $0x78] sm:$0xff]
  %v80 = vld [vmem:[%s0] sm:$0xf]
  %v81 = vld [vmem:[%s0 + $0x4] sm:$0xf]
  %v82 = vld [vmem:[%s0 + $0x8] sm:$0xf]
  %v83 = vld [vmem:[%s0 + $0xc] sm:$0xf]
  %v84 = vld [vmem:[%s0 + $0x10] sm:$0xf]
  %v85 = vld [vmem:[%s0 + $0x14] sm:$0xf]
  %v86 = vld [vmem:[%s0 + $0x18] sm:$0xf]
  %v87 = vld [vmem:[%s0 + $0x1c] sm:$0xf]
  %v88 = vld [vmem:[%s0 + $0x20] sm:$0xf]
  %v89 = vld [vmem:[%s0 + $0x24] sm:$0xf]
  %v90 = vld [vmem:[%s0 + $0x28] sm:$0xf]
  %v91 = vld [vmem:[%s0 + $0x2c] sm:$0xf]
  %v92 = vld [vmem:[%s0 + $0x30] sm:$0xf]
  %v93 = vld [vmem:[%s0 + $0x34] sm:$0xf]
  %v94 = vld [vmem:[%s0 + $0x38] sm:$0xf]
  %v95 = vld [vmem:[%s0 + $0x3c] sm:$0xf]
  %v112 = vunpack.c.l.b16 %v80
  %v113 = vunpack.c.l.b16 %v81
  %v114 = vunpack.c.l.b16 %v82
  %v115 = vunpack.c.l.b16 %v83
  %v116 = vunpack.c.l.b16 %v84
  %v117 = vunpack.c.l.b16 %v85
  %v118 = vunpack.c.l.b16 %v86
  %v119 = vunpack.c.l.b16 %v87
  %v120 = vunpack.c.l.b16 %v88
  %v121 = vunpack.c.l.b16 %v89
  %v122 = vunpack.c.l.b16 %v90
  %v123 = vunpack.c.l.b16 %v91
  %v124 = vunpack.c.l.b16 %v92
  %v125 = vunpack.c.l.b16 %v93
  %v126 = vunpack.c.l.b16 %v94
  %v127 = vunpack.c.l.b16 %v95
  %v128 = vpack.c.b16 %v113, %v112
  %v129 = vpack.c.b16 %v115, %v114
  %v130 = vpack.c.b16 %v117, %v116
  %v131 = vpack.c.b16 %v119, %v118
  %v132 = vpack.c.b16 %v121, %v120
  %v133 = vpack.c.b16 %v123, %v122
  %v134 = vpack.c.b16 %v125, %v124
  %v135 = vpack.c.b16 %v127, %v126
  %v160 = vunpack.c.l.b16 %v48
  %v161 = vunpack.c.l.b16 %v49
  %v162 = vunpack.c.l.b16 %v50
  %v163 = vunpack.c.l.b16 %v51
  %v164 = vunpack.c.l.b16 %v52
  %v165 = vunpack.c.l.b16 %v53
  %v166 = vunpack.c.l.b16 %v54
  %v167 = vunpack.c.l.b16 %v55
  %v168 = vunpack.c.l.b16 %v56
  %v169 = vunpack.c.l.b16 %v57
  %v170 = vunpack.c.l.b16 %v58
  %v171 = vunpack.c.l.b16 %v59
  %v172 = vunpack.c.l.b16 %v60
  %v173 = vunpack.c.l.b16 %v61
  %v174 = vunpack.c.l.b16 %v62
  %v175 = vunpack.c.l.b16 %v63
  %v176 = vpack.c.b16 %v161, %v160
  %v177 = vpack.c.b16 %v163, %v162
  %v178 = vpack.c.b16 %v165, %v164
  %v179 = vpack.c.b16 %v167, %v166
  %v180 = vpack.c.b16 %v169, %v168
  %v181 = vpack.c.b16 %v171, %v170
  %v182 = vpack.c.b16 %v173, %v172
  %v183 = vpack.c.b16 %v175, %v174
  %192 = vmatprep.subr.bf16.mxu0 0
  %193 = vmatpush1.bf16.msra.mxu0 %v176
  %194 = vmatprep.subr.bf16.mxu0 0
  %195 = vmatpush1.bf16.msra.mxu0 %v177
  %196 = vmatprep.subr.bf16.mxu0 0
  %197 = vmatpush1.bf16.msra.mxu0 %v178
  %198 = vmatprep.subr.bf16.mxu0 0
  %199 = vmatpush1.bf16.msra.mxu0 %v179
  %200 = vmatprep.subr.bf16.mxu0 0
  %201 = vmatpush1.bf16.msra.mxu0 %v180
  %202 = vmatprep.subr.bf16.mxu0 0
  %203 = vmatpush1.bf16.msra.mxu0 %v181
  %204 = vmatprep.subr.bf16.mxu0 0
  %205 = vmatpush1.bf16.msra.mxu0 %v182
  %206 = vmatprep.subr.bf16.mxu0 0
  %207 = vmatpush1.bf16.msra.mxu0 %v183
  %208 = vmatprep.subr.bf16.mxu0 0
  %209 = vmatpush1.bf16.msra.mxu0 0
  %210 = vmatprep.subr.bf16.mxu0 0
  %211 = vmatpush1.bf16.msra.mxu0 0
  %212 = vmatprep.subr.bf16.mxu0 0
  %213 = vmatpush1.bf16.msra.mxu0 0
  %214 = vmatprep.subr.bf16.mxu0 0
  %215 = vmatpush1.bf16.msra.mxu0 0
  %216 = vmatprep.subr.bf16.mxu0 0
  %217 = vmatpush1.bf16.msra.mxu0 0
  %218 = vmatprep.subr.bf16.mxu0 0
  %219 = vmatpush1.bf16.msra.mxu0 0
  %220 = vmatprep.subr.bf16.mxu0 0
  %221 = vmatpush1.bf16.msra.mxu0 0
  %222 = vmatprep.subr.bf16.mxu0 0
  %223 = vmatpush1.bf16.msra.mxu0 0
  %224 = vmatprep.mubr.bf16.mxu0 0
  %225 = vmatmul.mubr.bf16.gmra.mrb[0].mxu0 %v128
  %v226 = vpop.f32.mrb[0].mxu0
  %v227 = vadd.f32 0.0, %v226
  %v228 = vpop.f32.mrb[0].mxu0
  %v229 = vpop.f32.mrb[0].mxu0
  %v230 = vadd.f32 0.0, %v229
  %v231 = vpop.f32.mrb[0].mxu0
  %232 = vmatprep.mubr.bf16.mxu0 0
  %233 = vmatmul.mubr.bf16.gmra.mrb[0].mxu0 %v129
  %v234 = vpop.f32.mrb[0].mxu0
  %v235 = vadd.f32 0.0, %v234
  %v236 = vpop.f32.mrb[0].mxu0
  %v237 = vpop.f32.mrb[0].mxu0
  %v238 = vadd.f32 0.0, %v237
  %v239 = vpop.f32.mrb[0].mxu0
  %240 = vmatprep.mubr.bf16.mxu0 0
  %241 = vmatmul.mubr.bf16.gmra.mrb[0].mxu0 %v130
  %v242 = vpop.f32.mrb[0].mxu0
  %v243 = vadd.f32 0.0, %v242
  %v244 = vpop.f32.mrb[0].mxu0
  %v245 = vpop.f32.mrb[0].mxu0
  %v246 = vadd.f32 0.0, %v245
  %v247 = vpop.f32.mrb[0].mxu0
  %248 = vmatprep.mubr.bf16.mxu0 0
  %249 = vmatmul.mubr.bf16.gmra.mrb[0].mxu0 %v131
  %v250 = vpop.f32.mrb[0].mxu0
  %v251 = vadd.f32 0.0, %v250
  %v252 = vpop.f32.mrb[0].mxu0
  %v253 = vpop.f32.mrb[0].mxu0
  %v254 = vadd.f32 0.0, %v253
  %v255 = vpop.f32.mrb[0].mxu0
  %256 = vmatprep.mubr.bf16.mxu0 0
  %257 = vmatmul.mubr.bf16.gmra.mrb[0].mxu0 %v132
  %v258 = vpop.f32.mrb[0].mxu0
  %v259 = vadd.f32 0.0, %v258
  %v260 = vpop.f32.mrb[0].mxu0
  %v261 = vpop.f32.mrb[0].mxu0
  %v262 = vadd.f32 0.0, %v261
  %v263 = vpop.f32.mrb[0].mxu0
  %264 = vmatprep.mubr.bf16.mxu0 0
  %265 = vmatmul.mubr.bf16.gmra.mrb[0].mxu0 %v133
  %v266 = vpop.f32.mrb[0].mxu0
  %v267 = vadd.f32 0.0, %v266
  %v268 = vpop.f32.mrb[0].mxu0
  %v269 = vpop.f32.mrb[0].mxu0
  %v270 = vadd.f32 0.0, %v269
  %v271 = vpop.f32.mrb[0].mxu0
  %272 = vmatprep.mubr.bf16.mxu0 0
  %273 = vmatmul.mubr.bf16.gmra.mrb[0].mxu0 %v134
  %v274 = vpop.f32.mrb[0].mxu0
  %v275 = vadd.f32 0.0, %v274
  %v276 = vpop.f32.mrb[0].mxu0
  %v277 = vpop.f32.mrb[0].mxu0
  %v278 = vadd.f32 0.0, %v277
  %v279 = vpop.f32.mrb[0].mxu0
  %280 = vmatprep.mubr.bf16.mxu0 0
  %281 = vmatmul.mubr.bf16.gmra.mrb[0].mxu0 %v135
  %v282 = vpop.f32.mrb[0].mxu0
  %v283 = vadd.f32 0.0, %v282
  %v284 = vpop.f32.mrb[0].mxu0
  %v285 = vpop.f32.mrb[0].mxu0
  %v286 = vadd.f32 0.0, %v285
  %v287 = vpop.f32.mrb[0].mxu0
  %288 = vdwg.mxu0
  %v289 = vadd.f32 %v64, %v227
  %v290 = vadd.f32 %v65, %v230
  %v291 = vadd.f32 %v66, %v235
  %v292 = vadd.f32 %v67, %v238
  %v293 = vadd.f32 %v68, %v243
  %v294 = vadd.f32 %v69, %v246
  %v295 = vadd.f32 %v70, %v251
  %v296 = vadd.f32 %v71, %v254
  %v297 = vadd.f32 %v72, %v259
  %v298 = vadd.f32 %v73, %v262
  %v299 = vadd.f32 %v74, %v267
  %v300 = vadd.f32 %v75, %v270
  %v301 = vadd.f32 %v76, %v275
  %v302 = vadd.f32 %v77, %v278
  %v303 = vadd.f32 %v78, %v283
  %v304 = vadd.f32 %v79, %v286
  %305 = vst [vmem:[#allocation2] sm:$0xff] %v289
  %306 = vst [vmem:[#allocation2 + $0x8] sm:$0xff] %v290
  %307 = vst [vmem:[#allocation2 + $0x10] sm:$0xff] %v291
  %308 = vst [vmem:[#allocation2 + $0x18] sm:$0xff] %v292
  %309 = vst [vmem:[#allocation2 + $0x20] sm:$0xff] %v293
  %310 = vst [vmem:[#allocation2 + $0x28] sm:$0xff] %v294
  %311 = vst [vmem:[#allocation2 + $0x30] sm:$0xff] %v295
  %312 = vst [vmem:[#allocation2 + $0x38] sm:$0xff] %v296
  %313 = vst [vmem:[#allocation2 + $0x40] sm:$0xff] %v297
  %314 = vst [vmem:[#allocation2 + $0x48] sm:$0xff] %v298
  %315 = vst [vmem:[#allocation2 + $0x50] sm:$0xff] %v299
  %316 = vst [vmem:[#allocation2 + $0x58] sm:$0xff] %v300
  %317 = vst [vmem:[#allocation2 + $0x60] sm:$0xff] %v301
  %318 = vst [vmem:[#allocation2 + $0x68] sm:$0xff] %v302
  %319 = vst [vmem:[#allocation2 + $0x70] sm:$0xff] %v303
  %320 = vst [vmem:[#allocation2 + $0x78] sm:$0xff] %v304
  // Predicated region
  $region26: #{gnn_forward.5} parent=0 // pred_check
    %p321 = pneg %p23
  $region27: #{gnn_forward.5} parent=0 // pred_check_branch
    %323 = sbr.rel (%p321) target = $region29
  $region28: #{gnn_forward.5} parent=0 // pred_region
    %v324 = vld [vmem:[#allocation2] sm:$0xff]
    %v325 = vld [vmem:[#allocation2 + $0x8] sm:$0xff]
    %v326 = vld [vmem:[#allocation2 + $0x10] sm:$0xff]
    %v327 = vld [vmem:[#allocation2 + $0x18] sm:$0xff]
    %v328 = vld [vmem:[#allocation2 + $0x20] sm:$0xff]
    %v329 = vld [vmem:[#allocation2 + $0x28] sm:$0xff]
    %v330 = vld [vmem:[#allocation2 + $0x30] sm:$0xff]
    %v331 = vld [vmem:[#allocation2 + $0x38] sm:$0xff]
    %v332 = vld [vmem:[#allocation2 + $0x40] sm:$0xff]
    %v333 = vld [vmem:[#allocation2 + $0x48] sm:$0xff]
    %v334 = vld [vmem:[#allocation2 + $0x50] sm:$0xff]
    %v335 = vld [vmem:[#allocation2 + $0x58] sm:$0xff]
    %v336 = vld [vmem:[#allocation2 + $0x60] sm:$0xff]
    %v337 = vld [vmem:[#allocation2 + $0x68] sm:$0xff]
    %v338 = vld [vmem:[#allocation2 + $0x70] sm:$0xff]
    %v339 = vld [vmem:[#allocation2 + $0x78] sm:$0xff]
    %v340 = vld [vmem:[%s2] sm:$0x1]
    %v342 = vlaneseq
    %v343 = vshrl.u32 %v342, 7
    %v344 = vsub.s32 0, %v343
    %v345 = vrot.slane %v340, %v344
    %v347 = vadd.f32 %v324, %v345
    %v348 = vadd.f32 %v325, %v345
    %v349 = vadd.f32 %v326, %v345
    %v350 = vadd.f32 %v327, %v345
    %v351 = vadd.f32 %v328, %v345
    %v352 = vadd.f32 %v329, %v345
    %v353 = vadd.f32 %v330, %v345
    %v354 = vadd.f32 %v331, %v345
    %v355 = vadd.f32 %v332, %v345
    %v356 = vadd.f32 %v333, %v345
    %v357 = vadd.f32 %v334, %v345
    %v358 = vadd.f32 %v335, %v345
    %v359 = vadd.f32 %v336, %v345
    %v360 = vadd.f32 %v337, %v345
    %v361 = vadd.f32 %v338, %v345
    %v362 = vadd.f32 %v339, %v345
    %vm363 = vcmp.ge.f32.partialorder %v347, 0.0
    %vm364 = vcmp.ge.f32.partialorder %v348, 0.0
    %vm365 = vcmp.ge.f32.partialorder %v349, 0.0
    %vm366 = vcmp.ge.f32.partialorder %v350, 0.0
    %vm367 = vcmp.ge.f32.partialorder %v351, 0.0
    %vm368 = vcmp.ge.f32.partialorder %v352, 0.0
    %vm369 = vcmp.ge.f32.partialorder %v353, 0.0
    %vm370 = vcmp.ge.f32.partialorder %v354, 0.0
    %vm371 = vcmp.ge.f32.partialorder %v355, 0.0
    %vm372 = vcmp.ge.f32.partialorder %v356, 0.0
    %vm373 = vcmp.ge.f32.partialorder %v357, 0.0
    %vm374 = vcmp.ge.f32.partialorder %v358, 0.0
    %vm375 = vcmp.ge.f32.partialorder %v359, 0.0
    %vm376 = vcmp.ge.f32.partialorder %v360, 0.0
    %vm377 = vcmp.ge.f32.partialorder %v361, 0.0
    %vm378 = vcmp.ge.f32.partialorder %v362, 0.0
    %v379 = vmul.f32 %v347, 0.01
    %v380 = vmul.f32 %v348, 0.01
    %v381 = vmul.f32 %v349, 0.01
    %v382 = vmul.f32 %v350, 0.01
    %v383 = vmul.f32 %v351, 0.01
    %v384 = vmul.f32 %v352, 0.01
    %v385 = vmul.f32 %v353, 0.01
    %v386 = vmul.f32 %v354, 0.01
    %v387 = vmul.f32 %v355, 0.01
    %v388 = vmul.f32 %v356, 0.01
    %v389 = vmul.f32 %v357, 0.01
    %v390 = vmul.f32 %v358, 0.01
    %v391 = vmul.f32 %v359, 0.01
    %v392 = vmul.f32 %v360, 0.01
    %v393 = vmul.f32 %v361, 0.01
    %v394 = vmul.f32 %v362, 0.01
    %v395 = vsel %vm363, %v347, %v379
    %v396 = vsel %vm364, %v348, %v380
    %v397 = vsel %vm365, %v349, %v381
    %v398 = vsel %vm366, %v350, %v382
    %v399 = vsel %vm367, %v351, %v383
    %v400 = vsel %vm368, %v352, %v384
    %v401 = vsel %vm369, %v353, %v385
    %v402 = vsel %vm370, %v354, %v386
    %v403 = vsel %vm371, %v355, %v387
    %v404 = vsel %vm372, %v356, %v388
    %v405 = vsel %vm373, %v357, %v389
    %v406 = vsel %vm374, %v358, %v390
    %v407 = vsel %vm375, %v359, %v391
    %v408 = vsel %vm376, %v360, %v392
    %v409 = vsel %vm377, %v361, %v393
    %v410 = vsel %vm378, %v362, %v394
    %v411 = vpack.c.bf16 %v396, %v395
    %v412 = vpack.c.bf16 %v398, %v397
    %v413 = vpack.c.bf16 %v400, %v399
    %v414 = vpack.c.bf16 %v402, %v401
    %v415 = vpack.c.bf16 %v404, %v403
    %v416 = vpack.c.bf16 %v406, %v405
    %v417 = vpack.c.bf16 %v408, %v407
    %v418 = vpack.c.bf16 %v410, %v409
    %v427 = vunpack.c.l.b16 %v411
    %v428 = vunpack.c.h.b16 %v411
    %v429 = vunpack.c.l.b16 %v412
    %v430 = vunpack.c.h.b16 %v412
    %v431 = vunpack.c.l.b16 %v413
    %v432 = vunpack.c.h.b16 %v413
    %v433 = vunpack.c.l.b16 %v414
    %v434 = vunpack.c.h.b16 %v414
    %v435 = vunpack.c.l.b16 %v415
    %v436 = vunpack.c.h.b16 %v415
    %v437 = vunpack.c.l.b16 %v416
    %v438 = vunpack.c.h.b16 %v416
    %v439 = vunpack.c.l.b16 %v417
    %v440 = vunpack.c.h.b16 %v417
    %v441 = vunpack.c.l.b16 %v418
    %v442 = vunpack.c.h.b16 %v418
    %v443 = vpack.c.b16 %v427, %v427
    %v444 = vpack.c.b16 %v428, %v428
    %v445 = vpack.c.b16 %v429, %v429
    %v446 = vpack.c.b16 %v430, %v430
    %v447 = vpack.c.b16 %v431, %v431
    %v448 = vpack.c.b16 %v432, %v432
    %v449 = vpack.c.b16 %v433, %v433
    %v450 = vpack.c.b16 %v434, %v434
    %v451 = vpack.c.b16 %v435, %v435
    %v452 = vpack.c.b16 %v436, %v436
    %v453 = vpack.c.b16 %v437, %v437
    %v454 = vpack.c.b16 %v438, %v438
    %v455 = vpack.c.b16 %v439, %v439
    %v456 = vpack.c.b16 %v440, %v440
    %v457 = vpack.c.b16 %v441, %v441
    %v458 = vpack.c.b16 %v442, %v442
    %475 = vst [vmem:[%s5] sm:$0xf] %v443
    %476 = vst [vmem:[%s5 + $0x4] sm:$0xf] %v444
    %477 = vst [vmem:[%s5 + $0x8] sm:$0xf] %v445
    %478 = vst [vmem:[%s5 + $0xc] sm:$0xf] %v446
    %479 = vst [vmem:[%s5 + $0x10] sm:$0xf] %v447
    %480 = vst [vmem:[%s5 + $0x14] sm:$0xf] %v448
    %481 = vst [vmem:[%s5 + $0x18] sm:$0xf] %v449
    %482 = vst [vmem:[%s5 + $0x1c] sm:$0xf] %v450
    %483 = vst [vmem:[%s5 + $0x20] sm:$0xf] %v451
    %484 = vst [vmem:[%s5 + $0x24] sm:$0xf] %v452
    %485 = vst [vmem:[%s5 + $0x28] sm:$0xf] %v453
    %486 = vst [vmem:[%s5 + $0x2c] sm:$0xf] %v454
    %487 = vst [vmem:[%s5 + $0x30] sm:$0xf] %v455
    %488 = vst [vmem:[%s5 + $0x34] sm:$0xf] %v456
    %489 = vst [vmem:[%s5 + $0x38] sm:$0xf] %v457
    %490 = vst [vmem:[%s5 + $0x3c] sm:$0xf] %v458
    %v491 = vld [vmem:[%s3] sm:$0xf]
    %v492 = vld [vmem:[%s3 + $0x4] sm:$0xf]
    %v493 = vld [vmem:[%s3 + $0x8] sm:$0xf]
    %v494 = vld [vmem:[%s3 + $0xc] sm:$0xf]
    %v495 = vld [vmem:[%s3 + $0x10] sm:$0xf]
    %v496 = vld [vmem:[%s3 + $0x14] sm:$0xf]
    %v497 = vld [vmem:[%s3 + $0x18] sm:$0xf]
    %v498 = vld [vmem:[%s3 + $0x1c] sm:$0xf]
    %v499 = vld [vmem:[%s3 + $0x20] sm:$0xf]
    %v500 = vld [vmem:[%s3 + $0x24] sm:$0xf]
    %v501 = vld [vmem:[%s3 + $0x28] sm:$0xf]
    %v502 = vld [vmem:[%s3 + $0x2c] sm:$0xf]
    %v503 = vld [vmem:[%s3 + $0x30] sm:$0xf]
    %v504 = vld [vmem:[%s3 + $0x34] sm:$0xf]
    %v505 = vld [vmem:[%s3 + $0x38] sm:$0xf]
    %v506 = vld [vmem:[%s3 + $0x3c] sm:$0xf]
    %v507 = vld [vmem:[%s4] sm:$0x1]
    %v509 = vlaneseq
    %v510 = vshrl.u32 %v509, 7
    %v511 = vsub.s32 0, %v510
    %v512 = vrot.slane %v507, %v511
    %v530 = vunpack.c.l.b16 %v491
    %v531 = vunpack.c.l.b16 %v492
    %v532 = vunpack.c.l.b16 %v493
    %v533 = vunpack.c.l.b16 %v494
    %v534 = vunpack.c.l.b16 %v495
    %v535 = vunpack.c.l.b16 %v496
    %v536 = vunpack.c.l.b16 %v497
    %v537 = vunpack.c.l.b16 %v498
    %v538 = vunpack.c.l.b16 %v499
    %v539 = vunpack.c.l.b16 %v500
    %v540 = vunpack.c.l.b16 %v501
    %v541 = vunpack.c.l.b16 %v502
    %v542 = vunpack.c.l.b16 %v503
    %v543 = vunpack.c.l.b16 %v504
    %v544 = vunpack.c.l.b16 %v505
    %v545 = vunpack.c.l.b16 %v506
    %v546 = vpack.c.b16 %v531, %v530
    %v547 = vpack.c.b16 %v533, %v532
    %v548 = vpack.c.b16 %v535, %v534
    %v549 = vpack.c.b16 %v537, %v536
    %v550 = vpack.c.b16 %v539, %v538
    %v551 = vpack.c.b16 %v541, %v540
    %v552 = vpack.c.b16 %v543, %v542
    %v553 = vpack.c.b16 %v545, %v544
    %562 = vmatprep.subr.bf16.mxu0 0
    %563 = vmatpush1.bf16.msra.mxu0 %v546
    %564 = vmatprep.subr.bf16.mxu0 0
    %565 = vmatpush1.bf16.msra.mxu0 %v547
    %566 = vmatprep.subr.bf16.mxu0 0
    %567 = vmatpush1.bf16.msra.mxu0 %v548
    %568 = vmatprep.subr.bf16.mxu0 0
    %569 = vmatpush1.bf16.msra.mxu0 %v549
    %570 = vmatprep.subr.bf16.mxu0 0
    %571 = vmatpush1.bf16.msra.mxu0 %v550
    %572 = vmatprep.subr.bf16.mxu0 0
    %573 = vmatpush1.bf16.msra.mxu0 %v551
    %574 = vmatprep.subr.bf16.mxu0 0
    %575 = vmatpush1.bf16.msra.mxu0 %v552
    %576 = vmatprep.subr.bf16.mxu0 0
    %577 = vmatpush1.bf16.msra.mxu0 %v553
    %578 = vmatprep.subr.bf16.mxu0 0
    %579 = vmatpush1.bf16.msra.mxu0 0
    %580 = vmatprep.subr.bf16.mxu0 0
    %581 = vmatpush1.bf16.msra.mxu0 0
    %582 = vmatprep.subr.bf16.mxu0 0
    %583 = vmatpush1.bf16.msra.mxu0 0
    %584 = vmatprep.subr.bf16.mxu0 0
    %585 = vmatpush1.bf16.msra.mxu0 0
    %586 = vmatprep.subr.bf16.mxu0 0
    %587 = vmatpush1.bf16.msra.mxu0 0
    %588 = vmatprep.subr.bf16.mxu0 0
    %589 = vmatpush1.bf16.msra.mxu0 0
    %590 = vmatprep.subr.bf16.mxu0 0
    %591 = vmatpush1.bf16.msra.mxu0 0
    %592 = vmatprep.subr.bf16.mxu0 0
    %593 = vmatpush1.bf16.msra.mxu0 0
    %594 = vmatprep.mubr.bf16.mxu0 0
    %595 = vmatmul.mubr.bf16.gmra.mrb[0].mxu0 %v411
    %v596 = vpop.f32.mrb[0].mxu0
    %v597 = vadd.f32 %v512, %v596
    %v598 = vpop.f32.mrb[0].mxu0
    %v599 = vpop.f32.mrb[0].mxu0
    %v600 = vadd.f32 %v512, %v599
    %v601 = vpop.f32.mrb[0].mxu0
    %602 = vmatprep.mubr.bf16.mxu0 0
    %603 = vmatmul.mubr.bf16.gmra.mrb[0].mxu0 %v412
    %v604 = vpop.f32.mrb[0].mxu0
    %v605 = vadd.f32 %v512, %v604
    %v606 = vpop.f32.mrb[0].mxu0
    %v607 = vpop.f32.mrb[0].mxu0
    %v608 = vadd.f32 %v512, %v607
    %v609 = vpop.f32.mrb[0].mxu0
    %610 = vmatprep.mubr.bf16.mxu0 0
    %611 = vmatmul.mubr.bf16.gmra.mrb[0].mxu0 %v413
    %v612 = vpop.f32.mrb[0].mxu0
    %v613 = vadd.f32 %v512, %v612
    %v614 = vpop.f32.mrb[0].mxu0
    %v615 = vpop.f32.mrb[0].mxu0
    %v616 = vadd.f32 %v512, %v615
    %v617 = vpop.f32.mrb[0].mxu0
    %618 = vmatprep.mubr.bf16.mxu0 0
    %619 = vmatmul.mubr.bf16.gmra.mrb[0].mxu0 %v414
    %v620 = vpop.f32.mrb[0].mxu0
    %v621 = vadd.f32 %v512, %v620
    %v622 = vpop.f32.mrb[0].mxu0
    %v623 = vpop.f32.mrb[0].mxu0
    %v624 = vadd.f32 %v512, %v623
    %v625 = vpop.f32.mrb[0].mxu0
    %626 = vmatprep.mubr.bf16.mxu0 0
    %627 = vmatmul.mubr.bf16.gmra.mrb[0].mxu0 %v415
    %v628 = vpop.f32.mrb[0].mxu0
    %v629 = vadd.f32 %v512, %v628
    %v630 = vpop.f32.mrb[0].mxu0
    %v631 = vpop.f32.mrb[0].mxu0
    %v632 = vadd.f32 %v512, %v631
    %v633 = vpop.f32.mrb[0].mxu0
    %634 = vmatprep.mubr.bf16.mxu0 0
    %635 = vmatmul.mubr.bf16.gmra.mrb[0].mxu0 %v416
    %v636 = vpop.f32.mrb[0].mxu0
    %v637 = vadd.f32 %v512, %v636
    %v638 = vpop.f32.mrb[0].mxu0
    %v639 = vpop.f32.mrb[0].mxu0
    %v640 = vadd.f32 %v512, %v639
    %v641 = vpop.f32.mrb[0].mxu0
    %642 = vmatprep.mubr.bf16.mxu0 0
    %643 = vmatmul.mubr.bf16.gmra.mrb[0].mxu0 %v417
    %v644 = vpop.f32.mrb[0].mxu0
    %v645 = vadd.f32 %v512, %v644
    %v646 = vpop.f32.mrb[0].mxu0
    %v647 = vpop.f32.mrb[0].mxu0
    %v648 = vadd.f32 %v512, %v647
    %v649 = vpop.f32.mrb[0].mxu0
    %650 = vmatprep.mubr.bf16.mxu0 0
    %651 = vmatmul.mubr.bf16.gmra.mrb[0].mxu0 %v418
    %v652 = vpop.f32.mrb[0].mxu0
    %v653 = vadd.f32 %v512, %v652
    %v654 = vpop.f32.mrb[0].mxu0
    %v655 = vpop.f32.mrb[0].mxu0
    %v656 = vadd.f32 %v512, %v655
    %v657 = vpop.f32.mrb[0].mxu0
    %658 = vdwg.mxu0
    %659 = vst [vmem:[%s6] sm:$0xff] %v597
    %660 = vst [vmem:[%s6 + $0x8] sm:$0xff] %v600
    %661 = vst [vmem:[%s6 + $0x10] sm:$0xff] %v605
    %662 = vst [vmem:[%s6 + $0x18] sm:$0xff] %v608
    %663 = vst [vmem:[%s6 + $0x20] sm:$0xff] %v613
    %664 = vst [vmem:[%s6 + $0x28] sm:$0xff] %v616
    %665 = vst [vmem:[%s6 + $0x30] sm:$0xff] %v621
    %666 = vst [vmem:[%s6 + $0x38] sm:$0xff] %v624
    %667 = vst [vmem:[%s6 + $0x40] sm:$0xff] %v629
    %668 = vst [vmem:[%s6 + $0x48] sm:$0xff] %v632
    %669 = vst [vmem:[%s6 + $0x50] sm:$0xff] %v637
    %670 = vst [vmem:[%s6 + $0x58] sm:$0xff] %v640
    %671 = vst [vmem:[%s6 + $0x60] sm:$0xff] %v645
    %672 = vst [vmem:[%s6 + $0x68] sm:$0xff] %v648
    %673 = vst [vmem:[%s6 + $0x70] sm:$0xff] %v653
    %674 = vst [vmem:[%s6 + $0x78] sm:$0xff] %v656
  $region29: #{gnn_forward.5} parent=0 // pred_fallthru
    _
  // Predicated region
  $region30: #{gnn_forward.5} parent=0 // pred_check
    _
  $region31: #{gnn_forward.5} parent=0 // pred_check_branch
    %676 = sbr.rel (0) target = $region33
  $region32: #{gnn_forward.5} parent=0 // pred_region
    _
  $region33: #{gnn_forward.5} parent=0 // pred_fallthru
    _
  // Predicated region
  $region34: #{gnn_forward.5} parent=0 // pred_check
    _
  $region35: #{gnn_forward.5} parent=0 // pred_check_branch
    %678 = sbr.rel (0) target = $region37
  $region36: #{gnn_forward.5} parent=0 // pred_region
    _
  $region37: #{gnn_forward.5} parent=0 // pred_fallthru
    _
  // Predicated region
  $region38: #{gnn_forward.5} parent=0 // pred_check
    _
  $region39: #{gnn_forward.5} parent=0 // pred_check_branch
    %680 = sbr.rel (0) target = $region41
  $region40: #{gnn_forward.5} parent=0 // pred_region
    _
  $region41: #{gnn_forward.5} parent=0 // pred_fallthru
    _
  // Predicated region
  $region42: #{gnn_forward.5} parent=0 // pred_check
    _
  $region43: #{gnn_forward.5} parent=0 // pred_check_branch
    %682 = sbr.rel (0) target = $region45
  $region44: #{gnn_forward.5} parent=0 // pred_region
    _
  $region45: #{gnn_forward.5} parent=0 // pred_fallthru
    _

</llo_original>
